<compile_context>
chip_gen: v7x
topology: tpu7x:2x2x1
jax: 0.10.0
libtpu: 0.0.40
codegen_flags: <defaults>
</compile_context>

<pallas_src>
import jax
import jax.numpy as jnp
from jax.experimental import pallas as pl
from jax.experimental.pallas import tpu as pltpu

_W_NAMES = ("wa1", "wa2", "wh1", "wh2", "wh3", "wo")
_B_NAMES = ("ba1", "ba2", "bh1", "bh2", "bh3", "bo")
_LANE = 128


def _round_up(n, m):
    return ((n + m - 1) // m) * m


# --------------------------------------------------------------------------- kernels
def _make_kernel(bias_offsets, bias_widths, mode):
    """Build the fused MLP kernel. mode in {'both', 'logits', 'refined'}.
    bias_offsets/widths are static Python ints (all offsets 128-lane aligned)."""

    def _dense(a_bf16, w_ref, bias_ref, layer, relu):
        off, width = bias_offsets[layer], bias_widths[layer]
        y = jnp.dot(a_bf16, w_ref[...], preferred_element_type=jnp.float32)
        y = y + bias_ref[:, off:off + width]          # (1, width) broadcasts over rows
        if relu:
            y = jnp.maximum(y, 0.0)
        return y

    def _adapter(x_ref, wa1, wa2, bias_ref):
        x = x_ref[...].astype(jnp.bfloat16)           # no-op if x is already bf16
        h = _dense(x, wa1, bias_ref, 0, relu=True)
        return _dense(h.astype(jnp.bfloat16), wa2, bias_ref, 1, relu=False)

    def _head(refined_f32, wh1, wh2, wh3, wo, bias_ref):
        z = _dense(refined_f32.astype(jnp.bfloat16), wh1, bias_ref, 2, relu=True)
        z = _dense(z.astype(jnp.bfloat16), wh2, bias_ref, 3, relu=True)
        z = _dense(z.astype(jnp.bfloat16), wh3, bias_ref, 4, relu=True)
        return _dense(z.astype(jnp.bfloat16), wo, bias_ref, 5, relu=False)

    if mode == "both":
        def kernel(x_ref, wa1, wa2, wh1, wh2, wh3, wo, bias_ref,
                   refined_ref, logits_ref):
            refined = _adapter(x_ref, wa1, wa2, bias_ref)
            refined_ref[...] = refined.astype(refined_ref.dtype)
            logits = _head(refined, wh1, wh2, wh3, wo, bias_ref)
            logits_ref[...] = logits.astype(logits_ref.dtype)
        return kernel

    if mode == "logits":
        def kernel(x_ref, wa1, wa2, wh1, wh2, wh3, wo, bias_ref, logits_ref):
            refined = _adapter(x_ref, wa1, wa2, bias_ref)
            logits = _head(refined, wh1, wh2, wh3, wo, bias_ref)
            logits_ref[...] = logits.astype(logits_ref.dtype)
        return kernel

    def kernel(x_ref, wa1, wa2, bias_ref, refined_ref):
        refined = _adapter(x_ref, wa1, wa2, bias_ref)
        refined_ref[...] = refined.astype(refined_ref.dtype)
    return kernel


# --------------------------------------------------------------------------- packing
def pack_params(params, out_dtype=jnp.bfloat16):
    """Call ONCE per model (not per forward).
    * internal/hidden dims are zero-padded up to 128-lane multiples (exact: ReLU keeps
      padded zeros at zero and the matching padded weight rows are zero)
    * weights cast to bf16 (f32 accumulation on the MXU)
    * the 6 biases are packed into ONE 128-lane-aligned f32 buffer."""
    fins = [int(params[n].shape[0]) for n in _W_NAMES]
    fouts = [int(params[n].shape[1]) for n in _W_NAMES]

    # Pad the internal dims: bottleneck (L0 out / L1 in) and head hiddens h1,h2,h3.
    # Outputs of L1 (refined, user-visible) and L5 (num_classes) keep logical sizes.
    pouts = list(fouts)
    for l in (0, 2, 3, 4):
        pouts[l] = _round_up(fouts[l], _LANE)
    pins = list(fins)
    pins[1] = pouts[0]
    pins[3] = pouts[2]
    pins[4] = pouts[3]
    pins[5] = pouts[4]

    weights = []
    for n, fi, fo, pi, po in zip(_W_NAMES, fins, fouts, pins, pouts):
        w = jnp.zeros((pi, po), jnp.bfloat16)
        w = w.at[:fi, :fo].set(params[n].astype(jnp.bfloat16))
        weights.append(w)

    offsets, off = [], 0
    for po in pouts:
        offsets.append(off)
        off += _round_up(po, _LANE)
    bias_packed = jnp.zeros((1, off), jnp.float32)
    for o, n, fo in zip(offsets, _B_NAMES, fouts):
        bias_packed = bias_packed.at[:, o:o + fo].set(params[n].astype(jnp.float32))

    return dict(
        weights=tuple(weights),
        bias_packed=bias_packed,
        bias_offsets=tuple(offsets),
        bias_widths=tuple(pouts),
        refined_dim=fouts[1],
        num_classes=fouts[5],
        out_dtype=out_dtype,
    )


# --------------------------------------------------------------------------- driver
def _pick_tile(B, tb):
    tb = int(tb)
    if B <= 64:
        return B                                   # one full block (always legal)
    if B <= tb:
        # single-block case: split in two so both v7x TensorCores get a grid step
        return _round_up(pl.cdiv(B, 2), 16)
    return _round_up(tb, 16)                       # lane/sublane-friendly multi-step tile


def _run(x, packed, mode, tb=1024):
    B, D = x.shape
    ws = packed["weights"] if mode != "refined" else packed["weights"][:2]
    bias = packed["bias_packed"]
    out_dtype = packed["out_dtype"]
    refined_dim = packed["refined_dim"]
    num_classes = packed["num_classes"]

    tb = _pick_tile(B, tb)
    grid = (pl.cdiv(B, tb),)

    x_spec = pl.BlockSpec((tb, D), lambda i: (i, 0))
    w_specs = [pl.BlockSpec(tuple(int(d) for d in w.shape), lambda i: (0, 0))
               for w in ws]
    bias_spec = pl.BlockSpec(tuple(int(d) for d in bias.shape), lambda i: (0, 0))

    out_shapes, out_specs = [], []
    if mode in ("both", "refined"):
        out_shapes.append(jax.ShapeDtypeStruct((B, refined_dim), out_dtype))
        out_specs.append(pl.BlockSpec((tb, refined_dim), lambda i: (i, 0)))
    if mode in ("both", "logits"):
        out_shapes.append(jax.ShapeDtypeStruct((B, num_classes), out_dtype))
        out_specs.append(pl.BlockSpec((tb, num_classes), lambda i: (i, 0)))

    out_itemsize = jnp.dtype(out_dtype).itemsize
    flops = 2 * B * sum(int(w.shape[0]) * int(w.shape[1]) for w in ws)
    out_bytes = sum(B * int(s.shape[1]) * out_itemsize for s in out_shapes)
    bytes_accessed = (int(x.size) * x.dtype.itemsize
                      + sum(int(w.size) * 2 for w in ws)
                      + int(bias.size) * 4 + out_bytes)

    kernel = _make_kernel(packed["bias_offsets"], packed["bias_widths"], mode)
    outs = pl.pallas_call(
        kernel,
        grid=grid,
        in_specs=[x_spec] + w_specs + [bias_spec],
        out_specs=tuple(out_specs),
        out_shape=tuple(out_shapes),
        compiler_params=pltpu.CompilerParams(
            dimension_semantics=("parallel",)),        # megacore-shard the batch axis
        cost_estimate=pl.CostEstimate(
            flops=flops, transcendentals=0, bytes_accessed=bytes_accessed),
    )(x, *ws, bias)
    return outs


def adapter_forward_full(segment_feat, packed, tb=1024):
    """One fused pallas_call returning (refined_segment_feat, logits)."""
    refined, logits = _run(segment_feat, packed, "both", tb)
    return refined, logits


def adapter_forward(segment_feat, packed, prediction=True, tb=1024):
    """Matches Adapter.forward semantics for the non-PKG objective.
    prediction=True  -> logits only  (refined tensor is never written to HBM)
    prediction=False -> refined only (answer-head matmuls are skipped)."""
    if prediction:
        return _run(segment_feat, packed, "logits", tb)[0]
    return _run(segment_feat, packed, "refined", tb)[0]


def init_params(key, s3d_hidden_dim, bottleneck_dim, refined_dim, num_classes):
    assert refined_dim == s3d_hidden_dim  # adapter_refined_feat_dim == s3d_hidden_dim
    h1, h2, h3 = num_classes // 6, num_classes // 4, num_classes // 2
    dims = [
        ("wa1", "ba1", s3d_hidden_dim, bottleneck_dim),
        ("wa2", "ba2", bottleneck_dim, refined_dim),
        ("wh1", "bh1", refined_dim, h1),
        ("wh2", "bh2", h1, h2),
        ("wh3", "bh3", h2, h3),
        ("wo", "bo", h3, num_classes),
    ]
    params = {}
    for wname, bname, fin, fout in dims:
        key, kw, kb = jax.random.split(key, 3)
        bound = 1.0 / jnp.sqrt(float(fin))
        params[wname] = jax.random.uniform(kw, (fin, fout), jnp.float32, -bound, bound)
        params[bname] = jax.random.uniform(kb, (1, fout), jnp.float32, -bound, bound)
    return params


if __name__ == "__main__":
    key = jax.random.PRNGKey(0)
    B = 8
    S3D_HIDDEN_DIM = 512          # docstring: segment_feat is (B, 512)
    BOTTLENECK_DIM = 128
    REFINED_DIM = 512             # == S3D_HIDDEN_DIM (asserted in __init__)
    NUM_CLASSES = 384             # adapter_num_classes -> hidden dims 64 / 96 / 192

    key, kx, kp = jax.random.split(key, 3)
    x = jax.random.normal(kx, (B, S3D_HIDDEN_DIM), jnp.float32)
    params = init_params(kp, S3D_HIDDEN_DIM, BOTTLENECK_DIM, REFINED_DIM, NUM_CLASSES)

    packed = pack_params(params)                       # pack ONCE (model init)

    logits = adapter_forward(x, packed, prediction=True)        # logits-only kernel
    refined_only = adapter_forward(x, packed, prediction=False) # adapter-only kernel
    refined, logits_full = adapter_forward_full(x, packed)      # fused both
    jax.block_until_ready((logits, refined_only, refined, logits_full))

    # Pure-JAX reference using the same bf16-operand / f32-accumulate recipe.
    def ref_forward(xx, p):
        def dense(a, w, b, relu):
            y = jnp.dot(a.astype(jnp.bfloat16), w.astype(jnp.bfloat16),
                        preferred_element_type=jnp.float32) + b
            return jnp.maximum(y, 0.0) if relu else y
        h = dense(xx, p["wa1"], p["ba1"], True)
        r = dense(h, p["wa2"], p["ba2"], False)
        z = dense(r, p["wh1"], p["bh1"], True)
        z = dense(z, p["wh2"], p["bh2"], True)
        z = dense(z, p["wh3"], p["bh3"], True)
        return r, dense(z, p["wo"], p["bo"], False)

    r_ref, l_ref = ref_forward(x, params)
    tol = dict(atol=3e-2, rtol=3e-2)                   # bf16 output rounding headroom
    assert jnp.allclose(refined.astype(jnp.float32), r_ref, **tol)
    assert jnp.allclose(refined_only.astype(jnp.float32), r_ref, **tol)
    assert jnp.allclose(logits.astype(jnp.float32), l_ref, **tol)
    assert jnp.allclose(logits_full.astype(jnp.float32), l_ref, **tol)
    print("KERNEL_OK")
</pallas_src>

<mosaic_0001>
module attributes {stable_mosaic.version = 11 : i64} {
  func.func @kernel(%arg0: i32, %arg1: memref<8x512xf32, #tpu.memory_space<vmem>>, %arg2: memref<512x128xbf16, #tpu.memory_space<vmem>>, %arg3: memref<128x512xbf16, #tpu.memory_space<vmem>>, %arg4: memref<512x128xbf16, #tpu.memory_space<vmem>>, %arg5: memref<128x128xbf16, #tpu.memory_space<vmem>>, %arg6: memref<128x256xbf16, #tpu.memory_space<vmem>>, %arg7: memref<256x384xbf16, #tpu.memory_space<vmem>>, %arg8: memref<1x1536xf32, #tpu.memory_space<vmem>>, %arg9: memref<8x384xbf16, #tpu.memory_space<vmem>>) attributes {dimension_semantics = [#tpu.dimension_semantics<parallel>], iteration_bounds = array<i64: 1>, scalar_prefetch = 0 : i64, scratch_operands = 0 : i64, tpu.core_type = #tpu.core_type<tc>, window_params = [{transform_indices = @transform_0, window_bounds = array<i64: 8, 512>}, {pipeline_mode = #tpu.pipeline_mode<synchronous>, transform_indices = @transform_1, window_bounds = array<i64: 512, 128>}, {pipeline_mode = #tpu.pipeline_mode<synchronous>, transform_indices = @transform_2, window_bounds = array<i64: 128, 512>}, {pipeline_mode = #tpu.pipeline_mode<synchronous>, transform_indices = @transform_3, window_bounds = array<i64: 512, 128>}, {pipeline_mode = #tpu.pipeline_mode<synchronous>, transform_indices = @transform_4, window_bounds = array<i64: 128, 128>}, {pipeline_mode = #tpu.pipeline_mode<synchronous>, transform_indices = @transform_5, window_bounds = array<i64: 128, 256>}, {pipeline_mode = #tpu.pipeline_mode<synchronous>, transform_indices = @transform_6, window_bounds = array<i64: 256, 384>}, {pipeline_mode = #tpu.pipeline_mode<synchronous>, transform_indices = @transform_7, window_bounds = array<i64: 1, 1536>}, {transform_indices = @transform_8, window_bounds = array<i64: 8, 384>}]} {
    %c0 = arith.constant 0 : index
    %c0_0 = arith.constant 0 : index
    %0 = vector.load %arg1[%c0, %c0_0] : memref<8x512xf32, #tpu.memory_space<vmem>>, vector<8x512xf32>
    %1 = arith.truncf %0 : vector<8x512xf32> to vector<8x512xbf16>
    %c0_1 = arith.constant 0 : index
    %c0_2 = arith.constant 0 : index
    %2 = vector.load %arg2[%c0_1, %c0_2] : memref<512x128xbf16, #tpu.memory_space<vmem>>, vector<512x128xbf16>
    %cst = arith.constant dense<0.000000e+00> : vector<8x128xf32>
    %3 = tpu.matmul %1, %2, %cst {dimension_numbers = #tpu.dot_dimension_numbers<[1], [0], [0], [1], [0, 0, 1, 1], [], []>} : vector<8x512xbf16>, vector<512x128xbf16>, vector<8x128xf32> -> vector<8x128xf32>
    %c0_3 = arith.constant 0 : index
    %c0_4 = arith.constant 0 : index
    %4 = vector.load %arg8[%c0_3, %c0_4] : memref<1x1536xf32, #tpu.memory_space<vmem>>, vector<1x128xf32>
    %5 = vector.broadcast %4 : vector<1x128xf32> to vector<8x128xf32>
    %6 = arith.addf %3, %5 : vector<8x128xf32>
    %cst_5 = arith.constant 0.000000e+00 : f32
    %7 = vector.broadcast %cst_5 : f32 to vector<8x128xf32>
    %8 = arith.maximumf %6, %7 : vector<8x128xf32>
    %9 = arith.truncf %8 : vector<8x128xf32> to vector<8x128xbf16>
    %c0_6 = arith.constant 0 : index
    %c0_7 = arith.constant 0 : index
    %10 = vector.load %arg3[%c0_6, %c0_7] : memref<128x512xbf16, #tpu.memory_space<vmem>>, vector<128x512xbf16>
    %cst_8 = arith.constant dense<0.000000e+00> : vector<8x512xf32>
    %11 = tpu.matmul %9, %10, %cst_8 {dimension_numbers = #tpu.dot_dimension_numbers<[1], [0], [0], [1], [0, 0, 1, 1], [], []>} : vector<8x128xbf16>, vector<128x512xbf16>, vector<8x512xf32> -> vector<8x512xf32>
    %c0_9 = arith.constant 0 : index
    %c128 = arith.constant 128 : index
    %12 = vector.load %arg8[%c0_9, %c128] : memref<1x1536xf32, #tpu.memory_space<vmem>>, vector<1x512xf32>
    %13 = vector.broadcast %12 : vector<1x512xf32> to vector<8x512xf32>
    %14 = arith.addf %11, %13 : vector<8x512xf32>
    %15 = arith.truncf %14 : vector<8x512xf32> to vector<8x512xbf16>
    %c0_10 = arith.constant 0 : index
    %c0_11 = arith.constant 0 : index
    %16 = vector.load %arg4[%c0_10, %c0_11] : memref<512x128xbf16, #tpu.memory_space<vmem>>, vector<512x128xbf16>
    %cst_12 = arith.constant dense<0.000000e+00> : vector<8x128xf32>
    %17 = tpu.matmul %15, %16, %cst_12 {dimension_numbers = #tpu.dot_dimension_numbers<[1], [0], [0], [1], [0, 0, 1, 1], [], []>} : vector<8x512xbf16>, vector<512x128xbf16>, vector<8x128xf32> -> vector<8x128xf32>
    %c0_13 = arith.constant 0 : index
    %c640 = arith.constant 640 : index
    %18 = vector.load %arg8[%c0_13, %c640] : memref<1x1536xf32, #tpu.memory_space<vmem>>, vector<1x128xf32>
    %19 = vector.broadcast %18 : vector<1x128xf32> to vector<8x128xf32>
    %20 = arith.addf %17, %19 : vector<8x128xf32>
    %cst_14 = arith.constant 0.000000e+00 : f32
    %21 = vector.broadcast %cst_14 : f32 to vector<8x128xf32>
    %22 = arith.maximumf %20, %21 : vector<8x128xf32>
    %23 = arith.truncf %22 : vector<8x128xf32> to vector<8x128xbf16>
    %c0_15 = arith.constant 0 : index
    %c0_16 = arith.constant 0 : index
    %24 = vector.load %arg5[%c0_15, %c0_16] : memref<128x128xbf16, #tpu.memory_space<vmem>>, vector<128x128xbf16>
    %cst_17 = arith.constant dense<0.000000e+00> : vector<8x128xf32>
    %25 = tpu.matmul %23, %24, %cst_17 {dimension_numbers = #tpu.dot_dimension_numbers<[1], [0], [0], [1], [0, 0, 1, 1], [], []>} : vector<8x128xbf16>, vector<128x128xbf16>, vector<8x128xf32> -> vector<8x128xf32>
    %c0_18 = arith.constant 0 : index
    %c768 = arith.constant 768 : index
    %26 = vector.load %arg8[%c0_18, %c768] : memref<1x1536xf32, #tpu.memory_space<vmem>>, vector<1x128xf32>
    %27 = vector.broadcast %26 : vector<1x128xf32> to vector<8x128xf32>
    %28 = arith.addf %25, %27 : vector<8x128xf32>
    %cst_19 = arith.constant 0.000000e+00 : f32
    %29 = vector.broadcast %cst_19 : f32 to vector<8x128xf32>
    %30 = arith.maximumf %28, %29 : vector<8x128xf32>
    %31 = arith.truncf %30 : vector<8x128xf32> to vector<8x128xbf16>
    %c0_20 = arith.constant 0 : index
    %c0_21 = arith.constant 0 : index
    %32 = vector.load %arg6[%c0_20, %c0_21] : memref<128x256xbf16, #tpu.memory_space<vmem>>, vector<128x256xbf16>
    %cst_22 = arith.constant dense<0.000000e+00> : vector<8x256xf32>
    %33 = tpu.matmul %31, %32, %cst_22 {dimension_numbers = #tpu.dot_dimension_numbers<[1], [0], [0], [1], [0, 0, 1, 1], [], []>} : vector<8x128xbf16>, vector<128x256xbf16>, vector<8x256xf32> -> vector<8x256xf32>
    %c0_23 = arith.constant 0 : index
    %c896 = arith.constant 896 : index
    %34 = vector.load %arg8[%c0_23, %c896] : memref<1x1536xf32, #tpu.memory_space<vmem>>, vector<1x256xf32>
    %35 = vector.broadcast %34 : vector<1x256xf32> to vector<8x256xf32>
    %36 = arith.addf %33, %35 : vector<8x256xf32>
    %cst_24 = arith.constant 0.000000e+00 : f32
    %37 = vector.broadcast %cst_24 : f32 to vector<8x256xf32>
    %38 = arith.maximumf %36, %37 : vector<8x256xf32>
    %39 = arith.truncf %38 : vector<8x256xf32> to vector<8x256xbf16>
    %c0_25 = arith.constant 0 : index
    %c0_26 = arith.constant 0 : index
    %40 = vector.load %arg7[%c0_25, %c0_26] : memref<256x384xbf16, #tpu.memory_space<vmem>>, vector<256x384xbf16>
    %cst_27 = arith.constant dense<0.000000e+00> : vector<8x384xf32>
    %41 = tpu.matmul %39, %40, %cst_27 {dimension_numbers = #tpu.dot_dimension_numbers<[1], [0], [0], [1], [0, 0, 1, 1], [], []>} : vector<8x256xbf16>, vector<256x384xbf16>, vector<8x384xf32> -> vector<8x384xf32>
    %c0_28 = arith.constant 0 : index
    %c1152 = arith.constant 1152 : index
    %42 = vector.load %arg8[%c0_28, %c1152] : memref<1x1536xf32, #tpu.memory_space<vmem>>, vector<1x384xf32>
    %43 = vector.broadcast %42 : vector<1x384xf32> to vector<8x384xf32>
    %44 = arith.addf %41, %43 : vector<8x384xf32>
    %45 = arith.truncf %44 : vector<8x384xf32> to vector<8x384xbf16>
    %c0_29 = arith.constant 0 : index
    %c0_30 = arith.constant 0 : index
    %46 = vector.load %arg9[%c0_29, %c0_30] : memref<8x384xbf16, #tpu.memory_space<vmem>>, vector<8x384xbf16>
    tpu.vector_store %arg9[%c0_29, %c0_30], %45 {strides = array<i32>} : memref<8x384xbf16, #tpu.memory_space<vmem>>, vector<8x384xbf16>,
    return
  }
  func.func @transform_0(%arg0: i32) -> (i32, i32) {
    %c0_i32 = arith.constant 0 : i32
    %c0_i32_0 = arith.constant 0 : i32
    return %arg0, %c0_i32 : i32, i32
  }
  func.func @transform_1(%arg0: i32) -> (i32, i32) {
    %c0_i32 = arith.constant 0 : i32
    %c0_i32_0 = arith.constant 0 : i32
    %c0_i32_1 = arith.constant 0 : i32
    return %c0_i32, %c0_i32_0 : i32, i32
  }
  func.func @transform_2(%arg0: i32) -> (i32, i32) {
    %c0_i32 = arith.constant 0 : i32
    %c0_i32_0 = arith.constant 0 : i32
    %c0_i32_1 = arith.constant 0 : i32
    return %c0_i32, %c0_i32_0 : i32, i32
  }
  func.func @transform_3(%arg0: i32) -> (i32, i32) {
    %c0_i32 = arith.constant 0 : i32
    %c0_i32_0 = arith.constant 0 : i32
    %c0_i32_1 = arith.constant 0 : i32
    return %c0_i32, %c0_i32_0 : i32, i32
  }
  func.func @transform_4(%arg0: i32) -> (i32, i32) {
    %c0_i32 = arith.constant 0 : i32
    %c0_i32_0 = arith.constant 0 : i32
    %c0_i32_1 = arith.constant 0 : i32
    return %c0_i32, %c0_i32_0 : i32, i32
  }
  func.func @transform_5(%arg0: i32) -> (i32, i32) {
    %c0_i32 = arith.constant 0 : i32
    %c0_i32_0 = arith.constant 0 : i32
    %c0_i32_1 = arith.constant 0 : i32
    return %c0_i32, %c0_i32_0 : i32, i32
  }
  func.func @transform_6(%arg0: i32) -> (i32, i32) {
    %c0_i32 = arith.constant 0 : i32
    %c0_i32_0 = arith.constant 0 : i32
    %c0_i32_1 = arith.constant 0 : i32
    return %c0_i32, %c0_i32_0 : i32, i32
  }
  func.func @transform_7(%arg0: i32) -> (i32, i32) {
    %c0_i32 = arith.constant 0 : i32
    %c0_i32_0 = arith.constant 0 : i32
    %c0_i32_1 = arith.constant 0 : i32
    return %c0_i32, %c0_i32_0 : i32, i32
  }
  func.func @transform_8(%arg0: i32) -> (i32, i32) {
    %c0_i32 = arith.constant 0 : i32
    %c0_i32_0 = arith.constant 0 : i32
    return %arg0, %c0_i32 : i32, i32
  }
}

</mosaic_0001>

<llo_original>
// kernel: tpu_custom_call.1
$region0: #{tpu_custom_call.1}
  #allocation0 [shape = 'u32[]', space=smem, size = 0x4, offset = 0x4, fixed_abs, tag = 'smem constant byte address 0x4 - core index']
  #allocation1 [shape = 'u32[144,128]{1,0:T(1,128)}', space=vmem, size = 0x12000, scoped, tag = 'internal scratch']
  %s0 = inlined_call_operand.hbm [shape: f32[8,512], index: 0, kind: input, shape index: {}]
  %s1 = inlined_call_operand.hbm [shape: bf16[512,128], index: 1, kind: input, shape index: {}]
  %s2 = inlined_call_operand.hbm [shape: bf16[128,512], index: 2, kind: input, shape index: {}]
  %s3 = inlined_call_operand.hbm [shape: bf16[512,128], index: 3, kind: input, shape index: {}]
  %s4 = inlined_call_operand.hbm [shape: bf16[128,128], index: 4, kind: input, shape index: {}]
  %s5 = inlined_call_operand.hbm [shape: bf16[128,256], index: 5, kind: input, shape index: {}]
  %s6 = inlined_call_operand.hbm [shape: bf16[256,384], index: 6, kind: input, shape index: {}]
  %s7 = inlined_call_operand.vmem [shape: f32[1,1536], index: 7, kind: input, shape index: {}]
  %s8 = inlined_call_operand.hbm [shape: bf16[8,384], index: 8, kind: output, shape index: {}]
  %s9 = sld [smem:[#allocation0]]
  $region70: #{tpu_custom_call.1} parent=0
    _
  %s11 = ssub.s32 1, %s9
  %s12 = scalar_select 0, %s11, %s9
  $region1: #{tpu_custom_call.1} parent=0
    #allocation2 [shape = 'u8[16384]{0}', space=vmem, size = 0x4000, scoped, tag = 'input window, operand 0, single buffered']
    #allocation3 [shape = 's32[1]{0}', space=sflag, size = 0x4, scoped, tag = 'scoped memory for tpu_custom_call.1']
    #allocation4 [shape = 's32[1]{0}', space=sflag, size = 0x4, scoped, tag = 'scoped memory for tpu_custom_call.1']
    #allocation5 [shape = 'u8[131072]{0}', space=vmem, size = 0x20000, scoped, tag = 'input window, operand 1, single buffered']
    #allocation6 [shape = 's32[1]{0}', space=sflag, size = 0x4, scoped, tag = 'scoped memory for tpu_custom_call.1']
    #allocation7 [shape = 'u8[131072]{0}', space=vmem, size = 0x20000, scoped, tag = 'input window, operand 2, single buffered']
    #allocation8 [shape = 'u8[131072]{0}', space=vmem, size = 0x20000, scoped, tag = 'input window, operand 3, single buffered']
    #allocation9 [shape = 's32[1]{0}', space=sflag, size = 0x4, scoped, tag = 'scoped memory for tpu_custom_call.1']
    #allocation10 [shape = 'u8[32768]{0}', space=vmem, size = 0x8000, scoped, tag = 'input window, operand 4, single buffered']
    #allocation11 [shape = 'u8[65536]{0}', space=vmem, size = 0x10000, scoped, tag = 'input window, operand 5, single buffered']
    #allocation12 [shape = 's32[1]{0}', space=sflag, size = 0x4, scoped, tag = 'scoped memory for tpu_custom_call.1']
    #allocation13 [shape = 'u8[196608]{0}', space=vmem, size = 0x30000, scoped, tag = 'input window, operand 6, single buffered']
    #allocation14 [shape = 'u8[6144]{0}', space=vmem, size = 0x1800, scoped, tag = 'output window, operand 0, single buffered']
    %13 = vsyncpa [#allocation3], 0
    %14 = vsyncpa [#allocation6], 0
    %15 = vsyncpa [#allocation9], 0
    %16 = vsyncpa [#allocation12], 0
    %17 = vsyncpa [#allocation4], 0
    // Predicated region
    $region2: #{tpu_custom_call.1} parent=1 // pred_check
      _
    $region3: #{tpu_custom_call.1} parent=1 // pred_check_branch
      %19 = sbr.rel (0) target = $region5
    $region4: #{tpu_custom_call.1} parent=1 // pred_region
      %s21 = ssub.s32 512, 512
      %22 = vsyncadd [#allocation3], %s21
      %s24 = sshll.u32 [#allocation2], 4
      %s25 = int_to_ptr.vmem [resolvable:$true] %s24
      %27 = dma.hbm_to_vmem [thread:$0]  %s0, 512, %s25, [#allocation3]
    $region5: #{tpu_custom_call.1} parent=1 // pred_fallthru
      _
    // Predicated region
    $region6: #{tpu_custom_call.1} parent=1 // pred_check
      _
    $region7: #{tpu_custom_call.1} parent=1 // pred_check_branch
      %29 = sbr.rel (0) target = $region9
    $region8: #{tpu_custom_call.1} parent=1 // pred_region
      %s31 = ssub.s32 4096, 4096
      %32 = vsyncadd [#allocation6], %s31
      %s33 = sshll.u32 [#allocation5], 4
      %s34 = int_to_ptr.vmem [resolvable:$true] %s33
      %39 = dma.hbm_to_vmem [thread:$0]  %s1, 4096, %s34, [#allocation6], 64, 64, 4
    $region9: #{tpu_custom_call.1} parent=1 // pred_fallthru
      _
    // Predicated region
    $region10: #{tpu_custom_call.1} parent=1 // pred_check
      _
    $region11: #{tpu_custom_call.1} parent=1 // pred_check_branch
      %41 = sbr.rel (0) target = $region13
    $region12: #{tpu_custom_call.1} parent=1 // pred_region
      %s43 = ssub.s32 4096, 4096
      %44 = vsyncadd [#allocation6], %s43
      %s45 = sshll.u32 [#allocation7], 4
      %s46 = int_to_ptr.vmem [resolvable:$true] %s45
      %51 = dma.hbm_to_vmem [thread:$0]  %s2, 4096, %s46, [#allocation6], 256, 256, 16
    $region13: #{tpu_custom_call.1} parent=1 // pred_fallthru
      _
    // Predicated region
    $region14: #{tpu_custom_call.1} parent=1 // pred_check
      _
    $region15: #{tpu_custom_call.1} parent=1 // pred_check_branch
      %53 = sbr.rel (0) target = $region17
    $region16: #{tpu_custom_call.1} parent=1 // pred_region
      %s55 = ssub.s32 4096, 4096
      %56 = vsyncadd [#allocation9], %s55
      %s57 = sshll.u32 [#allocation8], 4
      %s58 = int_to_ptr.vmem [resolvable:$true] %s57
      %63 = dma.hbm_to_vmem [thread:$0]  %s3, 4096, %s58, [#allocation9], 64, 64, 4
    $region17: #{tpu_custom_call.1} parent=1 // pred_fallthru
      _
    // Predicated region
    $region18: #{tpu_custom_call.1} parent=1 // pred_check
      _
    $region19: #{tpu_custom_call.1} parent=1 // pred_check_branch
      %65 = sbr.rel (0) target = $region21
    $region20: #{tpu_custom_call.1} parent=1 // pred_region
      %s67 = ssub.s32 1024, 1024
      %68 = vsyncadd [#allocation9], %s67
      %s69 = sshll.u32 [#allocation10], 4
      %s70 = int_to_ptr.vmem [resolvable:$true] %s69
      %75 = dma.hbm_to_vmem [thread:$0]  %s4, 1024, %s70, [#allocation9], 64, 64, 4
    $region21: #{tpu_custom_call.1} parent=1 // pred_fallthru
      _
    // Predicated region
    $region22: #{tpu_custom_call.1} parent=1 // pred_check
      _
    $region23: #{tpu_custom_call.1} parent=1 // pred_check_branch
      %77 = sbr.rel (0) target = $region25
    $region24: #{tpu_custom_call.1} parent=1 // pred_region
      %s79 = ssub.s32 2048, 2048
      %80 = vsyncadd [#allocation12], %s79
      %s81 = sshll.u32 [#allocation11], 4
      %s82 = int_to_ptr.vmem [resolvable:$true] %s81
      %87 = dma.hbm_to_vmem [thread:$0]  %s5, 2048, %s82, [#allocation12], 128, 128, 8
    $region25: #{tpu_custom_call.1} parent=1 // pred_fallthru
      _
    // Predicated region
    $region26: #{tpu_custom_call.1} parent=1 // pred_check
      _
    $region27: #{tpu_custom_call.1} parent=1 // pred_check_branch
      %89 = sbr.rel (0) target = $region29
    $region28: #{tpu_custom_call.1} parent=1 // pred_region
      %s91 = ssub.s32 6144, 6144
      %92 = vsyncadd [#allocation12], %s91
      %s93 = sshll.u32 [#allocation13], 4
      %s94 = int_to_ptr.vmem [resolvable:$true] %s93
      %99 = dma.hbm_to_vmem [thread:$0]  %s6, 6144, %s94, [#allocation12], 192, 192, 12
    $region29: #{tpu_custom_call.1} parent=1 // pred_fallthru
      _
    // Predicated region
    $region30: #{tpu_custom_call.1} parent=1 // pred_check
      _
    $region31: #{tpu_custom_call.1} parent=1 // pred_check_branch
      %101 = sbr.rel (0) target = $region33
    $region32: #{tpu_custom_call.1} parent=1 // pred_region
      _
    $region33: #{tpu_custom_call.1} parent=1 // pred_fallthru
      _
    // Predicated region
    $region34: #{tpu_custom_call.1} parent=1 // pred_check
      _
    $region35: #{tpu_custom_call.1} parent=1 // pred_check_branch
      %103 = sbr.rel (0) target = $region37
    $region36: #{tpu_custom_call.1} parent=1 // pred_region
      %104 = dma.done [#allocation3], 512
    $region37: #{tpu_custom_call.1} parent=1 // pred_fallthru
      _
    // Predicated region
    $region38: #{tpu_custom_call.1} parent=1 // pred_check
      _
    $region39: #{tpu_custom_call.1} parent=1 // pred_check_branch
      %106 = sbr.rel (0) target = $region41
    $region40: #{tpu_custom_call.1} parent=1 // pred_region
      %107 = dma.done [#allocation6], 4096
    $region41: #{tpu_custom_call.1} parent=1 // pred_fallthru
      _
    // Predicated region
    $region42: #{tpu_custom_call.1} parent=1 // pred_check
      _
    $region43: #{tpu_custom_call.1} parent=1 // pred_check_branch
      %109 = sbr.rel (0) target = $region45
    $region44: #{tpu_custom_call.1} parent=1 // pred_region
      %110 = dma.done [#allocation6], 4096
    $region45: #{tpu_custom_call.1} parent=1 // pred_fallthru
      _
    // Predicated region
    $region46: #{tpu_custom_call.1} parent=1 // pred_check
      _
    $region47: #{tpu_custom_call.1} parent=1 // pred_check_branch
      %112 = sbr.rel (0) target = $region49
    $region48: #{tpu_custom_call.1} parent=1 // pred_region
      %113 = dma.done [#allocation9], 4096
    $region49: #{tpu_custom_call.1} parent=1 // pred_fallthru
      _
    // Predicated region
    $region50: #{tpu_custom_call.1} parent=1 // pred_check
      _
    $region51: #{tpu_custom_call.1} parent=1 // pred_check_branch
      %115 = sbr.rel (0) target = $region53
    $region52: #{tpu_custom_call.1} parent=1 // pred_region
      %116 = dma.done [#allocation9], 1024
    $region53: #{tpu_custom_call.1} parent=1 // pred_fallthru
      _
    // Predicated region
    $region54: #{tpu_custom_call.1} parent=1 // pred_check
      _
    $region55: #{tpu_custom_call.1} parent=1 // pred_check_branch
      %118 = sbr.rel (0) target = $region57
    $region56: #{tpu_custom_call.1} parent=1 // pred_region
      %119 = dma.done [#allocation12], 2048
    $region57: #{tpu_custom_call.1} parent=1 // pred_fallthru
      _
    // Predicated region
    $region58: #{tpu_custom_call.1} parent=1 // pred_check
      _
    $region59: #{tpu_custom_call.1} parent=1 // pred_check_branch
      %121 = sbr.rel (0) target = $region61
    $region60: #{tpu_custom_call.1} parent=1 // pred_region
      %122 = dma.done [#allocation12], 6144
    $region61: #{tpu_custom_call.1} parent=1 // pred_fallthru
      _
    %v124 = vld [vmem:[#allocation2] sm:$0xff]
    %v125 = vld [vmem:[#allocation2 + $0x8] sm:$0xff]
    %v126 = vld [vmem:[#allocation2 + $0x10] sm:$0xff]
    %v127 = vld [vmem:[#allocation2 + $0x18] sm:$0xff]
    %v128 = vpack.c.bf16 %v124, %v124
    %v129 = vpack.c.bf16 %v125, %v125
    %v130 = vpack.c.bf16 %v126, %v126
    %v131 = vpack.c.bf16 %v127, %v127
    %v132 = vld [vmem:[#allocation5] sm:$0xf]
    %v133 = vld [vmem:[#allocation5 + $0x4] sm:$0xf]
    %v134 = vld [vmem:[#allocation5 + $0x8] sm:$0xf]
    %v135 = vld [vmem:[#allocation5 + $0xc] sm:$0xf]
    %v136 = vld [vmem:[#allocation5 + $0x10] sm:$0xf]
    %v137 = vld [vmem:[#allocation5 + $0x14] sm:$0xf]
    %v138 = vld [vmem:[#allocation5 + $0x18] sm:$0xf]
    %v139 = vld [vmem:[#allocation5 + $0x1c] sm:$0xf]
    %v140 = vld [vmem:[#allocation5 + $0x20] sm:$0xf]
    %v141 = vld [vmem:[#allocation5 + $0x24] sm:$0xf]
    %v142 = vld [vmem:[#allocation5 + $0x28] sm:$0xf]
    %v143 = vld [vmem:[#allocation5 + $0x2c] sm:$0xf]
    %v144 = vld [vmem:[#allocation5 + $0x30] sm:$0xf]
    %v145 = vld [vmem:[#allocation5 + $0x34] sm:$0xf]
    %v146 = vld [vmem:[#allocation5 + $0x38] sm:$0xf]
    %v147 = vld [vmem:[#allocation5 + $0x3c] sm:$0xf]
    %v148 = vld [vmem:[#allocation5 + $0x40] sm:$0xf]
    %v149 = vld [vmem:[#allocation5 + $0x44] sm:$0xf]
    %v150 = vld [vmem:[#allocation5 + $0x48] sm:$0xf]
    %v151 = vld [vmem:[#allocation5 + $0x4c] sm:$0xf]
    %v152 = vld [vmem:[#allocation5 + $0x50] sm:$0xf]
    %v153 = vld [vmem:[#allocation5 + $0x54] sm:$0xf]
    %v154 = vld [vmem:[#allocation5 + $0x58] sm:$0xf]
    %v155 = vld [vmem:[#allocation5 + $0x5c] sm:$0xf]
    %v156 = vld [vmem:[#allocation5 + $0x60] sm:$0xf]
    %v157 = vld [vmem:[#allocation5 + $0x64] sm:$0xf]
    %v158 = vld [vmem:[#allocation5 + $0x68] sm:$0xf]
    %v159 = vld [vmem:[#allocation5 + $0x6c] sm:$0xf]
    %v160 = vld [vmem:[#allocation5 + $0x70] sm:$0xf]
    %v161 = vld [vmem:[#allocation5 + $0x74] sm:$0xf]
    %v162 = vld [vmem:[#allocation5 + $0x78] sm:$0xf]
    %v163 = vld [vmem:[#allocation5 + $0x7c] sm:$0xf]
    %v164 = vld [vmem:[#allocation5 + $0x80] sm:$0xf]
    %v165 = vld [vmem:[#allocation5 + $0x84] sm:$0xf]
    %v166 = vld [vmem:[#allocation5 + $0x88] sm:$0xf]
    %v167 = vld [vmem:[#allocation5 + $0x8c] sm:$0xf]
    %v168 = vld [vmem:[#allocation5 + $0x90] sm:$0xf]
    %v169 = vld [vmem:[#allocation5 + $0x94] sm:$0xf]
    %v170 = vld [vmem:[#allocation5 + $0x98] sm:$0xf]
    %v171 = vld [vmem:[#allocation5 + $0x9c] sm:$0xf]
    %v172 = vld [vmem:[#allocation5 + $0xa0] sm:$0xf]
    %v173 = vld [vmem:[#allocation5 + $0xa4] sm:$0xf]
    %v174 = vld [vmem:[#allocation5 + $0xa8] sm:$0xf]
    %v175 = vld [vmem:[#allocation5 + $0xac] sm:$0xf]
    %v176 = vld [vmem:[#allocation5 + $0xb0] sm:$0xf]
    %v177 = vld [vmem:[#allocation5 + $0xb4] sm:$0xf]
    %v178 = vld [vmem:[#allocation5 + $0xb8] sm:$0xf]
    %v179 = vld [vmem:[#allocation5 + $0xbc] sm:$0xf]
    %v180 = vld [vmem:[#allocation5 + $0xc0] sm:$0xf]
    %v181 = vld [vmem:[#allocation5 + $0xc4] sm:$0xf]
    %v182 = vld [vmem:[#allocation5 + $0xc8] sm:$0xf]
    %v183 = vld [vmem:[#allocation5 + $0xcc] sm:$0xf]
    %v184 = vld [vmem:[#allocation5 + $0xd0] sm:$0xf]
    %v185 = vld [vmem:[#allocation5 + $0xd4] sm:$0xf]
    %v186 = vld [vmem:[#allocation5 + $0xd8] sm:$0xf]
    %v187 = vld [vmem:[#allocation5 + $0xdc] sm:$0xf]
    %v188 = vld [vmem:[#allocation5 + $0xe0] sm:$0xf]
    %v189 = vld [vmem:[#allocation5 + $0xe4] sm:$0xf]
    %v190 = vld [vmem:[#allocation5 + $0xe8] sm:$0xf]
    %v191 = vld [vmem:[#allocation5 + $0xec] sm:$0xf]
    %v192 = vld [vmem:[#allocation5 + $0xf0] sm:$0xf]
    %v193 = vld [vmem:[#allocation5 + $0xf4] sm:$0xf]
    %v194 = vld [vmem:[#allocation5 + $0xf8] sm:$0xf]
    %v195 = vld [vmem:[#allocation5 + $0xfc] sm:$0xf]
    %v196 = vld [vmem:[%s7] sm:$0x1]
    %v198 = vlaneseq
    %v199 = vshrl.u32 %v198, 7
    %v200 = vsub.s32 0, %v199
    %v201 = vrot.slane %v196, %v200
    %v267 = vunpack.c.l.b16 %v132
    %v268 = vunpack.c.l.b16 %v133
    %v269 = vunpack.c.l.b16 %v134
    %v270 = vunpack.c.l.b16 %v135
    %v271 = vunpack.c.l.b16 %v136
    %v272 = vunpack.c.l.b16 %v137
    %v273 = vunpack.c.l.b16 %v138
    %v274 = vunpack.c.l.b16 %v139
    %v275 = vunpack.c.l.b16 %v140
    %v276 = vunpack.c.l.b16 %v141
    %v277 = vunpack.c.l.b16 %v142
    %v278 = vunpack.c.l.b16 %v143
    %v279 = vunpack.c.l.b16 %v144
    %v280 = vunpack.c.l.b16 %v145
    %v281 = vunpack.c.l.b16 %v146
    %v282 = vunpack.c.l.b16 %v147
    %v283 = vunpack.c.l.b16 %v148
    %v284 = vunpack.c.l.b16 %v149
    %v285 = vunpack.c.l.b16 %v150
    %v286 = vunpack.c.l.b16 %v151
    %v287 = vunpack.c.l.b16 %v152
    %v288 = vunpack.c.l.b16 %v153
    %v289 = vunpack.c.l.b16 %v154
    %v290 = vunpack.c.l.b16 %v155
    %v291 = vunpack.c.l.b16 %v156
    %v292 = vunpack.c.l.b16 %v157
    %v293 = vunpack.c.l.b16 %v158
    %v294 = vunpack.c.l.b16 %v159
    %v295 = vunpack.c.l.b16 %v160
    %v296 = vunpack.c.l.b16 %v161
    %v297 = vunpack.c.l.b16 %v162
    %v298 = vunpack.c.l.b16 %v163
    %v299 = vunpack.c.l.b16 %v164
    %v300 = vunpack.c.l.b16 %v165
    %v301 = vunpack.c.l.b16 %v166
    %v302 = vunpack.c.l.b16 %v167
    %v303 = vunpack.c.l.b16 %v168
    %v304 = vunpack.c.l.b16 %v169
    %v305 = vunpack.c.l.b16 %v170
    %v306 = vunpack.c.l.b16 %v171
    %v307 = vunpack.c.l.b16 %v172
    %v308 = vunpack.c.l.b16 %v173
    %v309 = vunpack.c.l.b16 %v174
    %v310 = vunpack.c.l.b16 %v175
    %v311 = vunpack.c.l.b16 %v176
    %v312 = vunpack.c.l.b16 %v177
    %v313 = vunpack.c.l.b16 %v178
    %v314 = vunpack.c.l.b16 %v179
    %v315 = vunpack.c.l.b16 %v180
    %v316 = vunpack.c.l.b16 %v181
    %v317 = vunpack.c.l.b16 %v182
    %v318 = vunpack.c.l.b16 %v183
    %v319 = vunpack.c.l.b16 %v184
    %v320 = vunpack.c.l.b16 %v185
    %v321 = vunpack.c.l.b16 %v186
    %v322 = vunpack.c.l.b16 %v187
    %v323 = vunpack.c.l.b16 %v188
    %v324 = vunpack.c.l.b16 %v189
    %v325 = vunpack.c.l.b16 %v190
    %v326 = vunpack.c.l.b16 %v191
    %v327 = vunpack.c.l.b16 %v192
    %v328 = vunpack.c.l.b16 %v193
    %v329 = vunpack.c.l.b16 %v194
    %v330 = vunpack.c.l.b16 %v195
    %v331 = vpack.c.b16 %v268, %v267
    %v332 = vpack.c.b16 %v270, %v269
    %v333 = vpack.c.b16 %v272, %v271
    %v334 = vpack.c.b16 %v274, %v273
    %v335 = vpack.c.b16 %v276, %v275
    %v336 = vpack.c.b16 %v278, %v277
    %v337 = vpack.c.b16 %v280, %v279
    %v338 = vpack.c.b16 %v282, %v281
    %v339 = vpack.c.b16 %v284, %v283
    %v340 = vpack.c.b16 %v286, %v285
    %v341 = vpack.c.b16 %v288, %v287
    %v342 = vpack.c.b16 %v290, %v289
    %v343 = vpack.c.b16 %v292, %v291
    %v344 = vpack.c.b16 %v294, %v293
    %v345 = vpack.c.b16 %v296, %v295
    %v346 = vpack.c.b16 %v298, %v297
    %v347 = vpack.c.b16 %v300, %v299
    %v348 = vpack.c.b16 %v302, %v301
    %v349 = vpack.c.b16 %v304, %v303
    %v350 = vpack.c.b16 %v306, %v305
    %v351 = vpack.c.b16 %v308, %v307
    %v352 = vpack.c.b16 %v310, %v309
    %v353 = vpack.c.b16 %v312, %v311
    %v354 = vpack.c.b16 %v314, %v313
    %v355 = vpack.c.b16 %v316, %v315
    %v356 = vpack.c.b16 %v318, %v317
    %v357 = vpack.c.b16 %v320, %v319
    %v358 = vpack.c.b16 %v322, %v321
    %v359 = vpack.c.b16 %v324, %v323
    %v360 = vpack.c.b16 %v326, %v325
    %v361 = vpack.c.b16 %v328, %v327
    %v362 = vpack.c.b16 %v330, %v329
    %395 = vmatprep.subr.bf16.mxu0 0
    %396 = vmatpush1.bf16.msra.mxu0 %v331
    %397 = vmatprep.subr.bf16.mxu0 0
    %398 = vmatpush1.bf16.msra.mxu0 %v332
    %399 = vmatprep.subr.bf16.mxu0 0
    %400 = vmatpush1.bf16.msra.mxu0 %v333
    %401 = vmatprep.subr.bf16.mxu0 0
    %402 = vmatpush1.bf16.msra.mxu0 %v334
    %403 = vmatprep.subr.bf16.mxu0 0
    %404 = vmatpush1.bf16.msra.mxu0 %v335
    %405 = vmatprep.subr.bf16.mxu0 0
    %406 = vmatpush1.bf16.msra.mxu0 %v336
    %407 = vmatprep.subr.bf16.mxu0 0
    %408 = vmatpush1.bf16.msra.mxu0 %v337
    %409 = vmatprep.subr.bf16.mxu0 0
    %410 = vmatpush1.bf16.msra.mxu0 %v338
    %411 = vmatprep.subr.bf16.mxu0 0
    %412 = vmatpush1.bf16.msra.mxu0 %v339
    %413 = vmatprep.subr.bf16.mxu0 0
    %414 = vmatpush1.bf16.msra.mxu0 %v340
    %415 = vmatprep.subr.bf16.mxu0 0
    %416 = vmatpush1.bf16.msra.mxu0 %v341
    %417 = vmatprep.subr.bf16.mxu0 0
    %418 = vmatpush1.bf16.msra.mxu0 %v342
    %419 = vmatprep.subr.bf16.mxu0 0
    %420 = vmatpush1.bf16.msra.mxu0 %v343
    %421 = vmatprep.subr.bf16.mxu0 0
    %422 = vmatpush1.bf16.msra.mxu0 %v344
    %423 = vmatprep.subr.bf16.mxu0 0
    %424 = vmatpush1.bf16.msra.mxu0 %v345
    %425 = vmatprep.subr.bf16.mxu0 0
    %426 = vmatpush1.bf16.msra.mxu0 %v346
    %427 = vmatprep.mubr.bf16.mxu0 %v129
    %428 = vmatmul.mubr.bf16.gmra.mrb[0].mxu0 %v128
    %v429 = vpop.f32.mrb[0].mxu0
    %v430 = vadd.f32 %v201, %v429
    %v431 = vpop.f32.mrb[0].mxu0
    %v432 = vpop.f32.mrb[0].mxu0
    %v433 = vpop.f32.mrb[0].mxu0
    %434 = vdwg.mxu0
    %435 = vmatprep.subr.bf16.mxu0 0
    %436 = vmatpush1.bf16.msra.mxu0 %v347
    %437 = vmatprep.subr.bf16.mxu0 0
    %438 = vmatpush1.bf16.msra.mxu0 %v348
    %439 = vmatprep.subr.bf16.mxu0 0
    %440 = vmatpush1.bf16.msra.mxu0 %v349
    %441 = vmatprep.subr.bf16.mxu0 0
    %442 = vmatpush1.bf16.msra.mxu0 %v350
    %443 = vmatprep.subr.bf16.mxu0 0
    %444 = vmatpush1.bf16.msra.mxu0 %v351
    %445 = vmatprep.subr.bf16.mxu0 0
    %446 = vmatpush1.bf16.msra.mxu0 %v352
    %447 = vmatprep.subr.bf16.mxu0 0
    %448 = vmatpush1.bf16.msra.mxu0 %v353
    %449 = vmatprep.subr.bf16.mxu0 0
    %450 = vmatpush1.bf16.msra.mxu0 %v354
    %451 = vmatprep.subr.bf16.mxu0 0
    %452 = vmatpush1.bf16.msra.mxu0 %v355
    %453 = vmatprep.subr.bf16.mxu0 0
    %454 = vmatpush1.bf16.msra.mxu0 %v356
    %455 = vmatprep.subr.bf16.mxu0 0
    %456 = vmatpush1.bf16.msra.mxu0 %v357
    %457 = vmatprep.subr.bf16.mxu0 0
    %458 = vmatpush1.bf16.msra.mxu0 %v358
    %459 = vmatprep.subr.bf16.mxu0 0
    %460 = vmatpush1.bf16.msra.mxu0 %v359
    %461 = vmatprep.subr.bf16.mxu0 0
    %462 = vmatpush1.bf16.msra.mxu0 %v360
    %463 = vmatprep.subr.bf16.mxu0 0
    %464 = vmatpush1.bf16.msra.mxu0 %v361
    %465 = vmatprep.subr.bf16.mxu0 0
    %466 = vmatpush1.bf16.msra.mxu0 %v362
    %467 = vmatprep.mubr.bf16.mxu0 %v131
    %468 = vmatmul.mubr.bf16.gmra.mrb[0].mxu0 %v130
    %v469 = vpop.f32.mrb[0].mxu0
    %v470 = vadd.f32 %v430, %v469
    %v471 = vpop.f32.mrb[0].mxu0
    %v472 = vpop.f32.mrb[0].mxu0
    %v473 = vpop.f32.mrb[0].mxu0
    %474 = vdwg.mxu0
    %v475 = vmax.f32 %v470, 0.0
    %v476 = vpack.c.bf16 %v475, %v475
    %v477 = vld [vmem:[#allocation7] sm:$0xff]
    %v478 = vld [vmem:[#allocation7 + $0x8] sm:$0xff]
    %v479 = vld [vmem:[#allocation7 + $0x10] sm:$0xff]
    %v480 = vld [vmem:[#allocation7 + $0x18] sm:$0xff]
    %v481 = vld [vmem:[#allocation7 + $0x20] sm:$0xff]
    %v482 = vld [vmem:[#allocation7 + $0x28] sm:$0xff]
    %v483 = vld [vmem:[#allocation7 + $0x30] sm:$0xff]
    %v484 = vld [vmem:[#allocation7 + $0x38] sm:$0xff]
    %v485 = vld [vmem:[#allocation7 + $0x40] sm:$0xff]
    %v486 = vld [vmem:[#allocation7 + $0x48] sm:$0xff]
    %v487 = vld [vmem:[#allocation7 + $0x50] sm:$0xff]
    %v488 = vld [vmem:[#allocation7 + $0x58] sm:$0xff]
    %v489 = vld [vmem:[#allocation7 + $0x60] sm:$0xff]
    %v490 = vld [vmem:[#allocation7 + $0x68] sm:$0xff]
    %v491 = vld [vmem:[#allocation7 + $0x70] sm:$0xff]
    %v492 = vld [vmem:[#allocation7 + $0x78] sm:$0xff]
    %v493 = vld [vmem:[#allocation7 + $0x80] sm:$0xff]
    %v494 = vld [vmem:[#allocation7 + $0x88] sm:$0xff]
    %v495 = vld [vmem:[#allocation7 + $0x90] sm:$0xff]
    %v496 = vld [vmem:[#allocation7 + $0x98] sm:$0xff]
    %v497 = vld [vmem:[#allocation7 + $0xa0] sm:$0xff]
    %v498 = vld [vmem:[#allocation7 + $0xa8] sm:$0xff]
    %v499 = vld [vmem:[#allocation7 + $0xb0] sm:$0xff]
    %v500 = vld [vmem:[#allocation7 + $0xb8] sm:$0xff]
    %v501 = vld [vmem:[#allocation7 + $0xc0] sm:$0xff]
    %v502 = vld [vmem:[#allocation7 + $0xc8] sm:$0xff]
    %v503 = vld [vmem:[#allocation7 + $0xd0] sm:$0xff]
    %v504 = vld [vmem:[#allocation7 + $0xd8] sm:$0xff]
    %v505 = vld [vmem:[#allocation7 + $0xe0] sm:$0xff]
    %v506 = vld [vmem:[#allocation7 + $0xe8] sm:$0xff]
    %v507 = vld [vmem:[#allocation7 + $0xf0] sm:$0xff]
    %v508 = vld [vmem:[#allocation7 + $0xf8] sm:$0xff]
    %v509 = vld [vmem:[%s7 + $0x1] sm:$0xf]
    %v511 = vlaneseq
    %v512 = vshrl.u32 %v511, 7
    %v513 = vsub.s32 0, %v512
    %v514 = vrot.slane %v509, %v513
    %v515 = vlaneseq
    %v516 = vshrl.u32 %v515, 7
    %v517 = vsub.s32 1, %v516
    %v518 = vrot.slane %v509, %v517
    %v519 = vlaneseq
    %v520 = vshrl.u32 %v519, 7
    %v521 = vsub.s32 2, %v520
    %v522 = vrot.slane %v509, %v521
    %v523 = vlaneseq
    %v524 = vshrl.u32 %v523, 7
    %v525 = vsub.s32 3, %v524
    %v526 = vrot.slane %v509, %v525
    %v563 = vunpack.c.l.b16 %v477
    %v564 = vunpack.c.h.b16 %v477
    %v565 = vunpack.c.l.b16 %v478
    %v566 = vunpack.c.h.b16 %v478
    %v567 = vunpack.c.l.b16 %v479
    %v568 = vunpack.c.h.b16 %v479
    %v569 = vunpack.c.l.b16 %v480
    %v570 = vunpack.c.h.b16 %v480
    %v571 = vunpack.c.l.b16 %v481
    %v572 = vunpack.c.h.b16 %v481
    %v573 = vunpack.c.l.b16 %v482
    %v574 = vunpack.c.h.b16 %v482
    %v575 = vunpack.c.l.b16 %v483
    %v576 = vunpack.c.h.b16 %v483
    %v577 = vunpack.c.l.b16 %v484
    %v578 = vunpack.c.h.b16 %v484
    %v579 = vunpack.c.l.b16 %v485
    %v580 = vunpack.c.h.b16 %v485
    %v581 = vunpack.c.l.b16 %v486
    %v582 = vunpack.c.h.b16 %v486
    %v583 = vunpack.c.l.b16 %v487
    %v584 = vunpack.c.h.b16 %v487
    %v585 = vunpack.c.l.b16 %v488
    %v586 = vunpack.c.h.b16 %v488
    %v587 = vunpack.c.l.b16 %v489
    %v588 = vunpack.c.h.b16 %v489
    %v589 = vunpack.c.l.b16 %v490
    %v590 = vunpack.c.h.b16 %v490
    %v591 = vunpack.c.l.b16 %v491
    %v592 = vunpack.c.h.b16 %v491
    %v593 = vunpack.c.l.b16 %v492
    %v594 = vunpack.c.h.b16 %v492
    %v595 = vunpack.c.l.b16 %v493
    %v596 = vunpack.c.h.b16 %v493
    %v597 = vunpack.c.l.b16 %v494
    %v598 = vunpack.c.h.b16 %v494
    %v599 = vunpack.c.l.b16 %v495
    %v600 = vunpack.c.h.b16 %v495
    %v601 = vunpack.c.l.b16 %v496
    %v602 = vunpack.c.h.b16 %v496
    %v603 = vunpack.c.l.b16 %v497
    %v604 = vunpack.c.h.b16 %v497
    %v605 = vunpack.c.l.b16 %v498
    %v606 = vunpack.c.h.b16 %v498
    %v607 = vunpack.c.l.b16 %v499
    %v608 = vunpack.c.h.b16 %v499
    %v609 = vunpack.c.l.b16 %v500
    %v610 = vunpack.c.h.b16 %v500
    %v611 = vunpack.c.l.b16 %v501
    %v612 = vunpack.c.h.b16 %v501
    %v613 = vunpack.c.l.b16 %v502
    %v614 = vunpack.c.h.b16 %v502
    %v615 = vunpack.c.l.b16 %v503
    %v616 = vunpack.c.h.b16 %v503
    %v617 = vunpack.c.l.b16 %v504
    %v618 = vunpack.c.h.b16 %v504
    %v619 = vunpack.c.l.b16 %v505
    %v620 = vunpack.c.h.b16 %v505
    %v621 = vunpack.c.l.b16 %v506
    %v622 = vunpack.c.h.b16 %v506
    %v623 = vunpack.c.l.b16 %v507
    %v624 = vunpack.c.h.b16 %v507
    %v625 = vunpack.c.l.b16 %v508
    %v626 = vunpack.c.h.b16 %v508
    %v627 = vpack.c.b16 %v567, %v563
    %v628 = vpack.c.b16 %v568, %v564
    %v629 = vpack.c.b16 %v569, %v565
    %v630 = vpack.c.b16 %v570, %v566
    %v631 = vpack.c.b16 %v575, %v571
    %v632 = vpack.c.b16 %v576, %v572
    %v633 = vpack.c.b16 %v577, %v573
    %v634 = vpack.c.b16 %v578, %v574
    %v635 = vpack.c.b16 %v583, %v579
    %v636 = vpack.c.b16 %v584, %v580
    %v637 = vpack.c.b16 %v585, %v581
    %v638 = vpack.c.b16 %v586, %v582
    %v639 = vpack.c.b16 %v591, %v587
    %v640 = vpack.c.b16 %v592, %v588
    %v641 = vpack.c.b16 %v593, %v589
    %v642 = vpack.c.b16 %v594, %v590
    %v643 = vpack.c.b16 %v599, %v595
    %v644 = vpack.c.b16 %v600, %v596
    %v645 = vpack.c.b16 %v601, %v597
    %v646 = vpack.c.b16 %v602, %v598
    %v647 = vpack.c.b16 %v607, %v603
    %v648 = vpack.c.b16 %v608, %v604
    %v649 = vpack.c.b16 %v609, %v605
    %v650 = vpack.c.b16 %v610, %v606
    %v651 = vpack.c.b16 %v615, %v611
    %v652 = vpack.c.b16 %v616, %v612
    %v653 = vpack.c.b16 %v617, %v613
    %v654 = vpack.c.b16 %v618, %v614
    %v655 = vpack.c.b16 %v623, %v619
    %v656 = vpack.c.b16 %v624, %v620
    %v657 = vpack.c.b16 %v625, %v621
    %v658 = vpack.c.b16 %v626, %v622
    %691 = vmatprep.subr.bf16.mxu0 %v628
    %692 = vmatpush1.bf16.msra.mxu0 %v627
    %693 = vmatprep.subr.bf16.mxu0 %v632
    %694 = vmatpush1.bf16.msra.mxu0 %v631
    %695 = vmatprep.subr.bf16.mxu0 %v636
    %696 = vmatpush1.bf16.msra.mxu0 %v635
    %697 = vmatprep.subr.bf16.mxu0 %v640
    %698 = vmatpush1.bf16.msra.mxu0 %v639
    %699 = vmatprep.subr.bf16.mxu0 %v644
    %700 = vmatpush1.bf16.msra.mxu0 %v643
    %701 = vmatprep.subr.bf16.mxu0 %v648
    %702 = vmatpush1.bf16.msra.mxu0 %v647
    %703 = vmatprep.subr.bf16.mxu0 %v652
    %704 = vmatpush1.bf16.msra.mxu0 %v651
    %705 = vmatprep.subr.bf16.mxu0 %v656
    %706 = vmatpush1.bf16.msra.mxu0 %v655
    %707 = vmatprep.subr.bf16.mxu0 0
    %708 = vmatpush1.bf16.msra.mxu0 0
    %709 = vmatprep.subr.bf16.mxu0 0
    %710 = vmatpush1.bf16.msra.mxu0 0
    %711 = vmatprep.subr.bf16.mxu0 0
    %712 = vmatpush1.bf16.msra.mxu0 0
    %713 = vmatprep.subr.bf16.mxu0 0
    %714 = vmatpush1.bf16.msra.mxu0 0
    %715 = vmatprep.subr.bf16.mxu0 0
    %716 = vmatpush1.bf16.msra.mxu0 0
    %717 = vmatprep.subr.bf16.mxu0 0
    %718 = vmatpush1.bf16.msra.mxu0 0
    %719 = vmatprep.subr.bf16.mxu0 0
    %720 = vmatpush1.bf16.msra.mxu0 0
    %721 = vmatprep.subr.bf16.mxu0 0
    %722 = vmatpush1.bf16.msra.mxu0 0
    %723 = vmatprep.mubr.bf16.mxu0 0
    %724 = vmatmul.mubr.bf16.gmra.mrb[0].mxu0 %v476
    %v725 = vpop.f32.mrb[0].mxu0
    %v726 = vadd.f32 %v514, %v725
    %v727 = vpop.f32.mrb[0].mxu0
    %v728 = vadd.f32 %v518, %v727
    %v729 = vpop.f32.mrb[0].mxu0
    %v730 = vpop.f32.mrb[0].mxu0
    %731 = vdwg.mxu0
    %732 = vmatprep.subr.bf16.mxu0 %v630
    %733 = vmatpush1.bf16.msra.mxu0 %v629
    %734 = vmatprep.subr.bf16.mxu0 %v634
    %735 = vmatpush1.bf16.msra.mxu0 %v633
    %736 = vmatprep.subr.bf16.mxu0 %v638
    %737 = vmatpush1.bf16.msra.mxu0 %v637
    %738 = vmatprep.subr.bf16.mxu0 %v642
    %739 = vmatpush1.bf16.msra.mxu0 %v641
    %740 = vmatprep.subr.bf16.mxu0 %v646
    %741 = vmatpush1.bf16.msra.mxu0 %v645
    %742 = vmatprep.subr.bf16.mxu0 %v650
    %743 = vmatpush1.bf16.msra.mxu0 %v649
    %744 = vmatprep.subr.bf16.mxu0 %v654
    %745 = vmatpush1.bf16.msra.mxu0 %v653
    %746 = vmatprep.subr.bf16.mxu0 %v658
    %747 = vmatpush1.bf16.msra.mxu0 %v657
    %748 = vmatprep.subr.bf16.mxu0 0
    %749 = vmatpush1.bf16.msra.mxu0 0
    %750 = vmatprep.subr.bf16.mxu0 0
    %751 = vmatpush1.bf16.msra.mxu0 0
    %752 = vmatprep.subr.bf16.mxu0 0
    %753 = vmatpush1.bf16.msra.mxu0 0
    %754 = vmatprep.subr.bf16.mxu0 0
    %755 = vmatpush1.bf16.msra.mxu0 0
    %756 = vmatprep.subr.bf16.mxu0 0
    %757 = vmatpush1.bf16.msra.mxu0 0
    %758 = vmatprep.subr.bf16.mxu0 0
    %759 = vmatpush1.bf16.msra.mxu0 0
    %760 = vmatprep.subr.bf16.mxu0 0
    %761 = vmatpush1.bf16.msra.mxu0 0
    %762 = vmatprep.subr.bf16.mxu0 0
    %763 = vmatpush1.bf16.msra.mxu0 0
    %764 = vmatprep.mubr.bf16.mxu0 0
    %765 = vmatmul.mubr.bf16.gmra.mrb[0].mxu0 %v476
    %v766 = vpop.f32.mrb[0].mxu0
    %v767 = vadd.f32 %v522, %v766
    %v768 = vpop.f32.mrb[0].mxu0
    %v769 = vadd.f32 %v526, %v768
    %v770 = vpop.f32.mrb[0].mxu0
    %v771 = vpop.f32.mrb[0].mxu0
    %772 = vdwg.mxu0
    %v773 = vpack.c.bf16 %v726, %v726
    %v774 = vpack.c.bf16 %v728, %v728
    %v775 = vpack.c.bf16 %v767, %v767
    %v776 = vpack.c.bf16 %v769, %v769
    %v777 = vld [vmem:[#allocation8] sm:$0xf]
    %v778 = vld [vmem:[#allocation8 + $0x4] sm:$0xf]
    %v779 = vld [vmem:[#allocation8 + $0x8] sm:$0xf]
    %v780 = vld [vmem:[#allocation8 + $0xc] sm:$0xf]
    %v781 = vld [vmem:[#allocation8 + $0x10] sm:$0xf]
    %v782 = vld [vmem:[#allocation8 + $0x14] sm:$0xf]
    %v783 = vld [vmem:[#allocation8 + $0x18] sm:$0xf]
    %v784 = vld [vmem:[#allocation8 + $0x1c] sm:$0xf]
    %v785 = vld [vmem:[#allocation8 + $0x20] sm:$0xf]
    %v786 = vld [vmem:[#allocation8 + $0x24] sm:$0xf]
    %v787 = vld [vmem:[#allocation8 + $0x28] sm:$0xf]
    %v788 = vld [vmem:[#allocation8 + $0x2c] sm:$0xf]
    %v789 = vld [vmem:[#allocation8 + $0x30] sm:$0xf]
    %v790 = vld [vmem:[#allocation8 + $0x34] sm:$0xf]
    %v791 = vld [vmem:[#allocation8 + $0x38] sm:$0xf]
    %v792 = vld [vmem:[#allocation8 + $0x3c] sm:$0xf]
    %v793 = vld [vmem:[#allocation8 + $0x40] sm:$0xf]
    %v794 = vld [vmem:[#allocation8 + $0x44] sm:$0xf]
    %v795 = vld [vmem:[#allocation8 + $0x48] sm:$0xf]
    %v796 = vld [vmem:[#allocation8 + $0x4c] sm:$0xf]
    %v797 = vld [vmem:[#allocation8 + $0x50] sm:$0xf]
    %v798 = vld [vmem:[#allocation8 + $0x54] sm:$0xf]
    %v799 = vld [vmem:[#allocation8 + $0x58] sm:$0xf]
    %v800 = vld [vmem:[#allocation8 + $0x5c] sm:$0xf]
    %v801 = vld [vmem:[#allocation8 + $0x60] sm:$0xf]
    %v802 = vld [vmem:[#allocation8 + $0x64] sm:$0xf]
    %v803 = vld [vmem:[#allocation8 + $0x68] sm:$0xf]
    %v804 = vld [vmem:[#allocation8 + $0x6c] sm:$0xf]
    %v805 = vld [vmem:[#allocation8 + $0x70] sm:$0xf]
    %v806 = vld [vmem:[#allocation8 + $0x74] sm:$0xf]
    %v807 = vld [vmem:[#allocation8 + $0x78] sm:$0xf]
    %v808 = vld [vmem:[#allocation8 + $0x7c] sm:$0xf]
    %v809 = vld [vmem:[#allocation8 + $0x80] sm:$0xf]
    %v810 = vld [vmem:[#allocation8 + $0x84] sm:$0xf]
    %v811 = vld [vmem:[#allocation8 + $0x88] sm:$0xf]
    %v812 = vld [vmem:[#allocation8 + $0x8c] sm:$0xf]
    %v813 = vld [vmem:[#allocation8 + $0x90] sm:$0xf]
    %v814 = vld [vmem:[#allocation8 + $0x94] sm:$0xf]
    %v815 = vld [vmem:[#allocation8 + $0x98] sm:$0xf]
    %v816 = vld [vmem:[#allocation8 + $0x9c] sm:$0xf]
    %v817 = vld [vmem:[#allocation8 + $0xa0] sm:$0xf]
    %v818 = vld [vmem:[#allocation8 + $0xa4] sm:$0xf]
    %v819 = vld [vmem:[#allocation8 + $0xa8] sm:$0xf]
    %v820 = vld [vmem:[#allocation8 + $0xac] sm:$0xf]
    %v821 = vld [vmem:[#allocation8 + $0xb0] sm:$0xf]
    %v822 = vld [vmem:[#allocation8 + $0xb4] sm:$0xf]
    %v823 = vld [vmem:[#allocation8 + $0xb8] sm:$0xf]
    %v824 = vld [vmem:[#allocation8 + $0xbc] sm:$0xf]
    %v825 = vld [vmem:[#allocation8 + $0xc0] sm:$0xf]
    %v826 = vld [vmem:[#allocation8 + $0xc4] sm:$0xf]
    %v827 = vld [vmem:[#allocation8 + $0xc8] sm:$0xf]
    %v828 = vld [vmem:[#allocation8 + $0xcc] sm:$0xf]
    %v829 = vld [vmem:[#allocation8 + $0xd0] sm:$0xf]
    %v830 = vld [vmem:[#allocation8 + $0xd4] sm:$0xf]
    %v831 = vld [vmem:[#allocation8 + $0xd8] sm:$0xf]
    %v832 = vld [vmem:[#allocation8 + $0xdc] sm:$0xf]
    %v833 = vld [vmem:[#allocation8 + $0xe0] sm:$0xf]
    %v834 = vld [vmem:[#allocation8 + $0xe4] sm:$0xf]
    %v835 = vld [vmem:[#allocation8 + $0xe8] sm:$0xf]
    %v836 = vld [vmem:[#allocation8 + $0xec] sm:$0xf]
    %v837 = vld [vmem:[#allocation8 + $0xf0] sm:$0xf]
    %v838 = vld [vmem:[#allocation8 + $0xf4] sm:$0xf]
    %v839 = vld [vmem:[#allocation8 + $0xf8] sm:$0xf]
    %v840 = vld [vmem:[#allocation8 + $0xfc] sm:$0xf]
    %v841 = vld [vmem:[%s7 + $0x5] sm:$0x1]
    %v843 = vlaneseq
    %v844 = vshrl.u32 %v843, 7
    %v845 = vsub.s32 0, %v844
    %v846 = vrot.slane %v841, %v845
    %v912 = vunpack.c.l.b16 %v777
    %v913 = vunpack.c.l.b16 %v778
    %v914 = vunpack.c.l.b16 %v779
    %v915 = vunpack.c.l.b16 %v780
    %v916 = vunpack.c.l.b16 %v781
    %v917 = vunpack.c.l.b16 %v782
    %v918 = vunpack.c.l.b16 %v783
    %v919 = vunpack.c.l.b16 %v784
    %v920 = vunpack.c.l.b16 %v785
    %v921 = vunpack.c.l.b16 %v786
    %v922 = vunpack.c.l.b16 %v787
    %v923 = vunpack.c.l.b16 %v788
    %v924 = vunpack.c.l.b16 %v789
    %v925 = vunpack.c.l.b16 %v790
    %v926 = vunpack.c.l.b16 %v791
    %v927 = vunpack.c.l.b16 %v792
    %v928 = vunpack.c.l.b16 %v793
    %v929 = vunpack.c.l.b16 %v794
    %v930 = vunpack.c.l.b16 %v795
    %v931 = vunpack.c.l.b16 %v796
    %v932 = vunpack.c.l.b16 %v797
    %v933 = vunpack.c.l.b16 %v798
    %v934 = vunpack.c.l.b16 %v799
    %v935 = vunpack.c.l.b16 %v800
    %v936 = vunpack.c.l.b16 %v801
    %v937 = vunpack.c.l.b16 %v802
    %v938 = vunpack.c.l.b16 %v803
    %v939 = vunpack.c.l.b16 %v804
    %v940 = vunpack.c.l.b16 %v805
    %v941 = vunpack.c.l.b16 %v806
    %v942 = vunpack.c.l.b16 %v807
    %v943 = vunpack.c.l.b16 %v808
    %v944 = vunpack.c.l.b16 %v809
    %v945 = vunpack.c.l.b16 %v810
    %v946 = vunpack.c.l.b16 %v811
    %v947 = vunpack.c.l.b16 %v812
    %v948 = vunpack.c.l.b16 %v813
    %v949 = vunpack.c.l.b16 %v814
    %v950 = vunpack.c.l.b16 %v815
    %v951 = vunpack.c.l.b16 %v816
    %v952 = vunpack.c.l.b16 %v817
    %v953 = vunpack.c.l.b16 %v818
    %v954 = vunpack.c.l.b16 %v819
    %v955 = vunpack.c.l.b16 %v820
    %v956 = vunpack.c.l.b16 %v821
    %v957 = vunpack.c.l.b16 %v822
    %v958 = vunpack.c.l.b16 %v823
    %v959 = vunpack.c.l.b16 %v824
    %v960 = vunpack.c.l.b16 %v825
    %v961 = vunpack.c.l.b16 %v826
    %v962 = vunpack.c.l.b16 %v827
    %v963 = vunpack.c.l.b16 %v828
    %v964 = vunpack.c.l.b16 %v829
    %v965 = vunpack.c.l.b16 %v830
    %v966 = vunpack.c.l.b16 %v831
    %v967 = vunpack.c.l.b16 %v832
    %v968 = vunpack.c.l.b16 %v833
    %v969 = vunpack.c.l.b16 %v834
    %v970 = vunpack.c.l.b16 %v835
    %v971 = vunpack.c.l.b16 %v836
    %v972 = vunpack.c.l.b16 %v837
    %v973 = vunpack.c.l.b16 %v838
    %v974 = vunpack.c.l.b16 %v839
    %v975 = vunpack.c.l.b16 %v840
    %v976 = vpack.c.b16 %v913, %v912
    %v977 = vpack.c.b16 %v915, %v914
    %v978 = vpack.c.b16 %v917, %v916
    %v979 = vpack.c.b16 %v919, %v918
    %v980 = vpack.c.b16 %v921, %v920
    %v981 = vpack.c.b16 %v923, %v922
    %v982 = vpack.c.b16 %v925, %v924
    %v983 = vpack.c.b16 %v927, %v926
    %v984 = vpack.c.b16 %v929, %v928
    %v985 = vpack.c.b16 %v931, %v930
    %v986 = vpack.c.b16 %v933, %v932
    %v987 = vpack.c.b16 %v935, %v934
    %v988 = vpack.c.b16 %v937, %v936
    %v989 = vpack.c.b16 %v939, %v938
    %v990 = vpack.c.b16 %v941, %v940
    %v991 = vpack.c.b16 %v943, %v942
    %v992 = vpack.c.b16 %v945, %v944
    %v993 = vpack.c.b16 %v947, %v946
    %v994 = vpack.c.b16 %v949, %v948
    %v995 = vpack.c.b16 %v951, %v950
    %v996 = vpack.c.b16 %v953, %v952
    %v997 = vpack.c.b16 %v955, %v954
    %v998 = vpack.c.b16 %v957, %v956
    %v999 = vpack.c.b16 %v959, %v958
    %v1000 = vpack.c.b16 %v961, %v960
    %v1001 = vpack.c.b16 %v963, %v962
    %v1002 = vpack.c.b16 %v965, %v964
    %v1003 = vpack.c.b16 %v967, %v966
    %v1004 = vpack.c.b16 %v969, %v968
    %v1005 = vpack.c.b16 %v971, %v970
    %v1006 = vpack.c.b16 %v973, %v972
    %v1007 = vpack.c.b16 %v975, %v974
    %1040 = vmatprep.subr.bf16.mxu0 0
    %1041 = vmatpush1.bf16.msra.mxu0 %v976
    %1042 = vmatprep.subr.bf16.mxu0 0
    %1043 = vmatpush1.bf16.msra.mxu0 %v977
    %1044 = vmatprep.subr.bf16.mxu0 0
    %1045 = vmatpush1.bf16.msra.mxu0 %v978
    %1046 = vmatprep.subr.bf16.mxu0 0
    %1047 = vmatpush1.bf16.msra.mxu0 %v979
    %1048 = vmatprep.subr.bf16.mxu0 0
    %1049 = vmatpush1.bf16.msra.mxu0 %v980
    %1050 = vmatprep.subr.bf16.mxu0 0
    %1051 = vmatpush1.bf16.msra.mxu0 %v981
    %1052 = vmatprep.subr.bf16.mxu0 0
    %1053 = vmatpush1.bf16.msra.mxu0 %v982
    %1054 = vmatprep.subr.bf16.mxu0 0
    %1055 = vmatpush1.bf16.msra.mxu0 %v983
    %1056 = vmatprep.subr.bf16.mxu0 0
    %1057 = vmatpush1.bf16.msra.mxu0 %v984
    %1058 = vmatprep.subr.bf16.mxu0 0
    %1059 = vmatpush1.bf16.msra.mxu0 %v985
    %1060 = vmatprep.subr.bf16.mxu0 0
    %1061 = vmatpush1.bf16.msra.mxu0 %v986
    %1062 = vmatprep.subr.bf16.mxu0 0
    %1063 = vmatpush1.bf16.msra.mxu0 %v987
    %1064 = vmatprep.subr.bf16.mxu0 0
    %1065 = vmatpush1.bf16.msra.mxu0 %v988
    %1066 = vmatprep.subr.bf16.mxu0 0
    %1067 = vmatpush1.bf16.msra.mxu0 %v989
    %1068 = vmatprep.subr.bf16.mxu0 0
    %1069 = vmatpush1.bf16.msra.mxu0 %v990
    %1070 = vmatprep.subr.bf16.mxu0 0
    %1071 = vmatpush1.bf16.msra.mxu0 %v991
    %1072 = vmatprep.mubr.bf16.mxu0 %v774
    %1073 = vmatmul.mubr.bf16.gmra.mrb[0].mxu0 %v773
    %v1074 = vpop.f32.mrb[0].mxu0
    %v1075 = vadd.f32 %v846, %v1074
    %v1076 = vpop.f32.mrb[0].mxu0
    %v1077 = vpop.f32.mrb[0].mxu0
    %v1078 = vpop.f32.mrb[0].mxu0
    %1079 = vdwg.mxu0
    %1080 = vmatprep.subr.bf16.mxu0 0
    %1081 = vmatpush1.bf16.msra.mxu0 %v992
    %1082 = vmatprep.subr.bf16.mxu0 0
    %1083 = vmatpush1.bf16.msra.mxu0 %v993
    %1084 = vmatprep.subr.bf16.mxu0 0
    %1085 = vmatpush1.bf16.msra.mxu0 %v994
    %1086 = vmatprep.subr.bf16.mxu0 0
    %1087 = vmatpush1.bf16.msra.mxu0 %v995
    %1088 = vmatprep.subr.bf16.mxu0 0
    %1089 = vmatpush1.bf16.msra.mxu0 %v996
    %1090 = vmatprep.subr.bf16.mxu0 0
    %1091 = vmatpush1.bf16.msra.mxu0 %v997
    %1092 = vmatprep.subr.bf16.mxu0 0
    %1093 = vmatpush1.bf16.msra.mxu0 %v998
    %1094 = vmatprep.subr.bf16.mxu0 0
    %1095 = vmatpush1.bf16.msra.mxu0 %v999
    %1096 = vmatprep.subr.bf16.mxu0 0
    %1097 = vmatpush1.bf16.msra.mxu0 %v1000
    %1098 = vmatprep.subr.bf16.mxu0 0
    %1099 = vmatpush1.bf16.msra.mxu0 %v1001
    %1100 = vmatprep.subr.bf16.mxu0 0
    %1101 = vmatpush1.bf16.msra.mxu0 %v1002
    %1102 = vmatprep.subr.bf16.mxu0 0
    %1103 = vmatpush1.bf16.msra.mxu0 %v1003
    %1104 = vmatprep.subr.bf16.mxu0 0
    %1105 = vmatpush1.bf16.msra.mxu0 %v1004
    %1106 = vmatprep.subr.bf16.mxu0 0
    %1107 = vmatpush1.bf16.msra.mxu0 %v1005
    %1108 = vmatprep.subr.bf16.mxu0 0
    %1109 = vmatpush1.bf16.msra.mxu0 %v1006
    %1110 = vmatprep.subr.bf16.mxu0 0
    %1111 = vmatpush1.bf16.msra.mxu0 %v1007
    %1112 = vmatprep.mubr.bf16.mxu0 %v776
    %1113 = vmatmul.mubr.bf16.gmra.mrb[0].mxu0 %v775
    %v1114 = vpop.f32.mrb[0].mxu0
    %v1115 = vadd.f32 %v1075, %v1114
    %v1116 = vpop.f32.mrb[0].mxu0
    %v1117 = vpop.f32.mrb[0].mxu0
    %v1118 = vpop.f32.mrb[0].mxu0
    %1119 = vdwg.mxu0
    %v1120 = vmax.f32 %v1115, 0.0
    %v1121 = vpack.c.bf16 %v1120, %v1120
    %v1122 = vld [vmem:[#allocation10] sm:$0xf]
    %v1123 = vld [vmem:[#allocation10 + $0x4] sm:$0xf]
    %v1124 = vld [vmem:[#allocation10 + $0x8] sm:$0xf]
    %v1125 = vld [vmem:[#allocation10 + $0xc] sm:$0xf]
    %v1126 = vld [vmem:[#allocation10 + $0x10] sm:$0xf]
    %v1127 = vld [vmem:[#allocation10 + $0x14] sm:$0xf]
    %v1128 = vld [vmem:[#allocation10 + $0x18] sm:$0xf]
    %v1129 = vld [vmem:[#allocation10 + $0x1c] sm:$0xf]
    %v1130 = vld [vmem:[#allocation10 + $0x20] sm:$0xf]
    %v1131 = vld [vmem:[#allocation10 + $0x24] sm:$0xf]
    %v1132 = vld [vmem:[#allocation10 + $0x28] sm:$0xf]
    %v1133 = vld [vmem:[#allocation10 + $0x2c] sm:$0xf]
    %v1134 = vld [vmem:[#allocation10 + $0x30] sm:$0xf]
    %v1135 = vld [vmem:[#allocation10 + $0x34] sm:$0xf]
    %v1136 = vld [vmem:[#allocation10 + $0x38] sm:$0xf]
    %v1137 = vld [vmem:[#allocation10 + $0x3c] sm:$0xf]
    %v1138 = vld [vmem:[%s7 + $0x6] sm:$0x1]
    %v1140 = vlaneseq
    %v1141 = vshrl.u32 %v1140, 7
    %v1142 = vsub.s32 0, %v1141
    %v1143 = vrot.slane %v1138, %v1142
    %v1161 = vunpack.c.l.b16 %v1122
    %v1162 = vunpack.c.l.b16 %v1123
    %v1163 = vunpack.c.l.b16 %v1124
    %v1164 = vunpack.c.l.b16 %v1125
    %v1165 = vunpack.c.l.b16 %v1126
    %v1166 = vunpack.c.l.b16 %v1127
    %v1167 = vunpack.c.l.b16 %v1128
    %v1168 = vunpack.c.l.b16 %v1129
    %v1169 = vunpack.c.l.b16 %v1130
    %v1170 = vunpack.c.l.b16 %v1131
    %v1171 = vunpack.c.l.b16 %v1132
    %v1172 = vunpack.c.l.b16 %v1133
    %v1173 = vunpack.c.l.b16 %v1134
    %v1174 = vunpack.c.l.b16 %v1135
    %v1175 = vunpack.c.l.b16 %v1136
    %v1176 = vunpack.c.l.b16 %v1137
    %v1177 = vpack.c.b16 %v1162, %v1161
    %v1178 = vpack.c.b16 %v1164, %v1163
    %v1179 = vpack.c.b16 %v1166, %v1165
    %v1180 = vpack.c.b16 %v1168, %v1167
    %v1181 = vpack.c.b16 %v1170, %v1169
    %v1182 = vpack.c.b16 %v1172, %v1171
    %v1183 = vpack.c.b16 %v1174, %v1173
    %v1184 = vpack.c.b16 %v1176, %v1175
    %1193 = vmatprep.subr.bf16.mxu0 0
    %1194 = vmatpush1.bf16.msra.mxu0 %v1177
    %1195 = vmatprep.subr.bf16.mxu0 0
    %1196 = vmatpush1.bf16.msra.mxu0 %v1178
    %1197 = vmatprep.subr.bf16.mxu0 0
    %1198 = vmatpush1.bf16.msra.mxu0 %v1179
    %1199 = vmatprep.subr.bf16.mxu0 0
    %1200 = vmatpush1.bf16.msra.mxu0 %v1180
    %1201 = vmatprep.subr.bf16.mxu0 0
    %1202 = vmatpush1.bf16.msra.mxu0 %v1181
    %1203 = vmatprep.subr.bf16.mxu0 0
    %1204 = vmatpush1.bf16.msra.mxu0 %v1182
    %1205 = vmatprep.subr.bf16.mxu0 0
    %1206 = vmatpush1.bf16.msra.mxu0 %v1183
    %1207 = vmatprep.subr.bf16.mxu0 0
    %1208 = vmatpush1.bf16.msra.mxu0 %v1184
    %1209 = vmatprep.subr.bf16.mxu0 0
    %1210 = vmatpush1.bf16.msra.mxu0 0
    %1211 = vmatprep.subr.bf16.mxu0 0
    %1212 = vmatpush1.bf16.msra.mxu0 0
    %1213 = vmatprep.subr.bf16.mxu0 0
    %1214 = vmatpush1.bf16.msra.mxu0 0
    %1215 = vmatprep.subr.bf16.mxu0 0
    %1216 = vmatpush1.bf16.msra.mxu0 0
    %1217 = vmatprep.subr.bf16.mxu0 0
    %1218 = vmatpush1.bf16.msra.mxu0 0
    %1219 = vmatprep.subr.bf16.mxu0 0
    %1220 = vmatpush1.bf16.msra.mxu0 0
    %1221 = vmatprep.subr.bf16.mxu0 0
    %1222 = vmatpush1.bf16.msra.mxu0 0
    %1223 = vmatprep.subr.bf16.mxu0 0
    %1224 = vmatpush1.bf16.msra.mxu0 0
    %1225 = vmatprep.mubr.bf16.mxu0 0
    %1226 = vmatmul.mubr.bf16.gmra.mrb[0].mxu0 %v1121
    %v1227 = vpop.f32.mrb[0].mxu0
    %v1228 = vadd.f32 %v1143, %v1227
    %v1229 = vpop.f32.mrb[0].mxu0
    %v1230 = vpop.f32.mrb[0].mxu0
    %v1231 = vpop.f32.mrb[0].mxu0
    %1232 = vdwg.mxu0
    %v1233 = vmax.f32 %v1228, 0.0
    %v1234 = vpack.c.bf16 %v1233, %v1233
    %v1235 = vld [vmem:[#allocation11] sm:$0xff]
    %v1236 = vld [vmem:[#allocation11 + $0x8] sm:$0xff]
    %v1237 = vld [vmem:[#allocation11 + $0x10] sm:$0xff]
    %v1238 = vld [vmem:[#allocation11 + $0x18] sm:$0xff]
    %v1239 = vld [vmem:[#allocation11 + $0x20] sm:$0xff]
    %v1240 = vld [vmem:[#allocation11 + $0x28] sm:$0xff]
    %v1241 = vld [vmem:[#allocation11 + $0x30] sm:$0xff]
    %v1242 = vld [vmem:[#allocation11 + $0x38] sm:$0xff]
    %v1243 = vld [vmem:[#allocation11 + $0x40] sm:$0xff]
    %v1244 = vld [vmem:[#allocation11 + $0x48] sm:$0xff]
    %v1245 = vld [vmem:[#allocation11 + $0x50] sm:$0xff]
    %v1246 = vld [vmem:[#allocation11 + $0x58] sm:$0xff]
    %v1247 = vld [vmem:[#allocation11 + $0x60] sm:$0xff]
    %v1248 = vld [vmem:[#allocation11 + $0x68] sm:$0xff]
    %v1249 = vld [vmem:[#allocation11 + $0x70] sm:$0xff]
    %v1250 = vld [vmem:[#allocation11 + $0x78] sm:$0xff]
    %v1251 = vld [vmem:[%s7 + $0x7] sm:$0x3]
    %v1253 = vlaneseq
    %v1254 = vshrl.u32 %v1253, 7
    %v1255 = vsub.s32 0, %v1254
    %v1256 = vrot.slane %v1251, %v1255
    %v1257 = vlaneseq
    %v1258 = vshrl.u32 %v1257, 7
    %v1259 = vsub.s32 1, %v1258
    %v1260 = vrot.slane %v1251, %v1259
    %v1279 = vunpack.c.l.b16 %v1235
    %v1280 = vunpack.c.h.b16 %v1235
    %v1281 = vunpack.c.l.b16 %v1236
    %v1282 = vunpack.c.h.b16 %v1236
    %v1283 = vunpack.c.l.b16 %v1237
    %v1284 = vunpack.c.h.b16 %v1237
    %v1285 = vunpack.c.l.b16 %v1238
    %v1286 = vunpack.c.h.b16 %v1238
    %v1287 = vunpack.c.l.b16 %v1239
    %v1288 = vunpack.c.h.b16 %v1239
    %v1289 = vunpack.c.l.b16 %v1240
    %v1290 = vunpack.c.h.b16 %v1240
    %v1291 = vunpack.c.l.b16 %v1241
    %v1292 = vunpack.c.h.b16 %v1241
    %v1293 = vunpack.c.l.b16 %v1242
    %v1294 = vunpack.c.h.b16 %v1242
    %v1295 = vunpack.c.l.b16 %v1243
    %v1296 = vunpack.c.h.b16 %v1243
    %v1297 = vunpack.c.l.b16 %v1244
    %v1298 = vunpack.c.h.b16 %v1244
    %v1299 = vunpack.c.l.b16 %v1245
    %v1300 = vunpack.c.h.b16 %v1245
    %v1301 = vunpack.c.l.b16 %v1246
    %v1302 = vunpack.c.h.b16 %v1246
    %v1303 = vunpack.c.l.b16 %v1247
    %v1304 = vunpack.c.h.b16 %v1247
    %v1305 = vunpack.c.l.b16 %v1248
    %v1306 = vunpack.c.h.b16 %v1248
    %v1307 = vunpack.c.l.b16 %v1249
    %v1308 = vunpack.c.h.b16 %v1249
    %v1309 = vunpack.c.l.b16 %v1250
    %v1310 = vunpack.c.h.b16 %v1250
    %v1311 = vpack.c.b16 %v1281, %v1279
    %v1312 = vpack.c.b16 %v1282, %v1280
    %v1313 = vpack.c.b16 %v1285, %v1283
    %v1314 = vpack.c.b16 %v1286, %v1284
    %v1315 = vpack.c.b16 %v1289, %v1287
    %v1316 = vpack.c.b16 %v1290, %v1288
    %v1317 = vpack.c.b16 %v1293, %v1291
    %v1318 = vpack.c.b16 %v1294, %v1292
    %v1319 = vpack.c.b16 %v1297, %v1295
    %v1320 = vpack.c.b16 %v1298, %v1296
    %v1321 = vpack.c.b16 %v1301, %v1299
    %v1322 = vpack.c.b16 %v1302, %v1300
    %v1323 = vpack.c.b16 %v1305, %v1303
    %v1324 = vpack.c.b16 %v1306, %v1304
    %v1325 = vpack.c.b16 %v1309, %v1307
    %v1326 = vpack.c.b16 %v1310, %v1308
    %1343 = vmatprep.subr.bf16.mxu0 %v1312
    %1344 = vmatpush1.bf16.msra.mxu0 %v1311
    %1345 = vmatprep.subr.bf16.mxu0 %v1314
    %1346 = vmatpush1.bf16.msra.mxu0 %v1313
    %1347 = vmatprep.subr.bf16.mxu0 %v1316
    %1348 = vmatpush1.bf16.msra.mxu0 %v1315
    %1349 = vmatprep.subr.bf16.mxu0 %v1318
    %1350 = vmatpush1.bf16.msra.mxu0 %v1317
    %1351 = vmatprep.subr.bf16.mxu0 %v1320
    %1352 = vmatpush1.bf16.msra.mxu0 %v1319
    %1353 = vmatprep.subr.bf16.mxu0 %v1322
    %1354 = vmatpush1.bf16.msra.mxu0 %v1321
    %1355 = vmatprep.subr.bf16.mxu0 %v1324
    %1356 = vmatpush1.bf16.msra.mxu0 %v1323
    %1357 = vmatprep.subr.bf16.mxu0 %v1326
    %1358 = vmatpush1.bf16.msra.mxu0 %v1325
    %1359 = vmatprep.subr.bf16.mxu0 0
    %1360 = vmatpush1.bf16.msra.mxu0 0
    %1361 = vmatprep.subr.bf16.mxu0 0
    %1362 = vmatpush1.bf16.msra.mxu0 0
    %1363 = vmatprep.subr.bf16.mxu0 0
    %1364 = vmatpush1.bf16.msra.mxu0 0
    %1365 = vmatprep.subr.bf16.mxu0 0
    %1366 = vmatpush1.bf16.msra.mxu0 0
    %1367 = vmatprep.subr.bf16.mxu0 0
    %1368 = vmatpush1.bf16.msra.mxu0 0
    %1369 = vmatprep.subr.bf16.mxu0 0
    %1370 = vmatpush1.bf16.msra.mxu0 0
    %1371 = vmatprep.subr.bf16.mxu0 0
    %1372 = vmatpush1.bf16.msra.mxu0 0
    %1373 = vmatprep.subr.bf16.mxu0 0
    %1374 = vmatpush1.bf16.msra.mxu0 0
    %1375 = vmatprep.mubr.bf16.mxu0 0
    %1376 = vmatmul.mubr.bf16.gmra.mrb[0].mxu0 %v1234
    %v1377 = vpop.f32.mrb[0].mxu0
    %v1378 = vadd.f32 %v1256, %v1377
    %v1379 = vpop.f32.mrb[0].mxu0
    %v1380 = vadd.f32 %v1260, %v1379
    %v1381 = vpop.f32.mrb[0].mxu0
    %v1382 = vpop.f32.mrb[0].mxu0
    %1383 = vdwg.mxu0
    %v1384 = vmax.f32 %v1378, 0.0
    %v1385 = vmax.f32 %v1380, 0.0
    %v1386 = vpack.c.bf16 %v1384, %v1384
    %v1387 = vpack.c.bf16 %v1385, %v1385
    %v1388 = vld [vmem:[#allocation13] sm:$0xff]
    %v1389 = vld [vmem:[#allocation13 + $0x8] sm:$0xf]
    %v1390 = vld [vmem:[#allocation13 + $0xc] sm:$0xff]
    %v1391 = vld [vmem:[#allocation13 + $0x14] sm:$0xf]
    %v1392 = vld [vmem:[#allocation13 + $0x18] sm:$0xff]
    %v1393 = vld [vmem:[#allocation13 + $0x20] sm:$0xf]
    %v1394 = vld [vmem:[#allocation13 + $0x24] sm:$0xff]
    %v1395 = vld [vmem:[#allocation13 + $0x2c] sm:$0xf]
    %v1396 = vld [vmem:[#allocation13 + $0x30] sm:$0xff]
    %v1397 = vld [vmem:[#allocation13 + $0x38] sm:$0xf]
    %v1398 = vld [vmem:[#allocation13 + $0x3c] sm:$0xff]
    %v1399 = vld [vmem:[#allocation13 + $0x44] sm:$0xf]
    %v1400 = vld [vmem:[#allocation13 + $0x48] sm:$0xff]
    %v1401 = vld [vmem:[#allocation13 + $0x50] sm:$0xf]
    %v1402 = vld [vmem:[#allocation13 + $0x54] sm:$0xff]
    %v1403 = vld [vmem:[#allocation13 + $0x5c] sm:$0xf]
    %v1404 = vld [vmem:[#allocation13 + $0x60] sm:$0xff]
    %v1405 = vld [vmem:[#allocation13 + $0x68] sm:$0xf]
    %v1406 = vld [vmem:[#allocation13 + $0x6c] sm:$0xff]
    %v1407 = vld [vmem:[#allocation13 + $0x74] sm:$0xf]
    %v1408 = vld [vmem:[#allocation13 + $0x78] sm:$0xff]
    %v1409 = vld [vmem:[#allocation13 + $0x80] sm:$0xf]
    %v1410 = vld [vmem:[#allocation13 + $0x84] sm:$0xff]
    %v1411 = vld [vmem:[#allocation13 + $0x8c] sm:$0xf]
    %v1412 = vld [vmem:[#allocation13 + $0x90] sm:$0xff]
    %v1413 = vld [vmem:[#allocation13 + $0x98] sm:$0xf]
    %v1414 = vld [vmem:[#allocation13 + $0x9c] sm:$0xff]
    %v1415 = vld [vmem:[#allocation13 + $0xa4] sm:$0xf]
    %v1416 = vld [vmem:[#allocation13 + $0xa8] sm:$0xff]
    %v1417 = vld [vmem:[#allocation13 + $0xb0] sm:$0xf]
    %v1418 = vld [vmem:[#allocation13 + $0xb4] sm:$0xff]
    %v1419 = vld [vmem:[#allocation13 + $0xbc] sm:$0xf]
    %v1420 = vld [vmem:[#allocation13 + $0xc0] sm:$0xff]
    %v1421 = vld [vmem:[#allocation13 + $0xc8] sm:$0xf]
    %v1422 = vld [vmem:[#allocation13 + $0xcc] sm:$0xff]
    %v1423 = vld [vmem:[#allocation13 + $0xd4] sm:$0xf]
    %v1424 = vld [vmem:[#allocation13 + $0xd8] sm:$0xff]
    %v1425 = vld [vmem:[#allocation13 + $0xe0] sm:$0xf]
    %v1426 = vld [vmem:[#allocation13 + $0xe4] sm:$0xff]
    %v1427 = vld [vmem:[#allocation13 + $0xec] sm:$0xf]
    %v1428 = vld [vmem:[#allocation13 + $0xf0] sm:$0xff]
    %v1429 = vld [vmem:[#allocation13 + $0xf8] sm:$0xf]
    %v1430 = vld [vmem:[#allocation13 + $0xfc] sm:$0xff]
    %v1431 = vld [vmem:[#allocation13 + $0x104] sm:$0xf]
    %v1432 = vld [vmem:[#allocation13 + $0x108] sm:$0xff]
    %v1433 = vld [vmem:[#allocation13 + $0x110] sm:$0xf]
    %v1434 = vld [vmem:[#allocation13 + $0x114] sm:$0xff]
    %v1435 = vld [vmem:[#allocation13 + $0x11c] sm:$0xf]
    %v1436 = vld [vmem:[#allocation13 + $0x120] sm:$0xff]
    %v1437 = vld [vmem:[#allocation13 + $0x128] sm:$0xf]
    %v1438 = vld [vmem:[#allocation13 + $0x12c] sm:$0xff]
    %v1439 = vld [vmem:[#allocation13 + $0x134] sm:$0xf]
    %v1440 = vld [vmem:[#allocation13 + $0x138] sm:$0xff]
    %v1441 = vld [vmem:[#allocation13 + $0x140] sm:$0xf]
    %v1442 = vld [vmem:[#allocation13 + $0x144] sm:$0xff]
    %v1443 = vld [vmem:[#allocation13 + $0x14c] sm:$0xf]
    %v1444 = vld [vmem:[#allocation13 + $0x150] sm:$0xff]
    %v1445 = vld [vmem:[#allocation13 + $0x158] sm:$0xf]
    %v1446 = vld [vmem:[#allocation13 + $0x15c] sm:$0xff]
    %v1447 = vld [vmem:[#allocation13 + $0x164] sm:$0xf]
    %v1448 = vld [vmem:[#allocation13 + $0x168] sm:$0xff]
    %v1449 = vld [vmem:[#allocation13 + $0x170] sm:$0xf]
    %v1450 = vld [vmem:[#allocation13 + $0x174] sm:$0xff]
    %v1451 = vld [vmem:[#allocation13 + $0x17c] sm:$0xf]
    %v1452 = vld [vmem:[%s7 + $0x9] sm:$0x7]
    %v1454 = vlaneseq
    %v1455 = vshrl.u32 %v1454, 7
    %v1456 = vsub.s32 0, %v1455
    %v1457 = vrot.slane %v1452, %v1456
    %v1458 = vlaneseq
    %v1459 = vshrl.u32 %v1458, 7
    %v1460 = vsub.s32 1, %v1459
    %v1461 = vrot.slane %v1452, %v1460
    %v1462 = vlaneseq
    %v1463 = vshrl.u32 %v1462, 7
    %v1464 = vsub.s32 2, %v1463
    %v1465 = vrot.slane %v1452, %v1464
    %v1533 = vunpack.c.l.b16 %v1388
    %v1534 = vunpack.c.h.b16 %v1388
    %v1535 = vunpack.c.l.b16 %v1389
    %v1536 = vunpack.c.l.b16 %v1390
    %v1537 = vunpack.c.h.b16 %v1390
    %v1538 = vunpack.c.l.b16 %v1391
    %v1539 = vunpack.c.l.b16 %v1392
    %v1540 = vunpack.c.h.b16 %v1392
    %v1541 = vunpack.c.l.b16 %v1393
    %v1542 = vunpack.c.l.b16 %v1394
    %v1543 = vunpack.c.h.b16 %v1394
    %v1544 = vunpack.c.l.b16 %v1395
    %v1545 = vunpack.c.l.b16 %v1396
    %v1546 = vunpack.c.h.b16 %v1396
    %v1547 = vunpack.c.l.b16 %v1397
    %v1548 = vunpack.c.l.b16 %v1398
    %v1549 = vunpack.c.h.b16 %v1398
    %v1550 = vunpack.c.l.b16 %v1399
    %v1551 = vunpack.c.l.b16 %v1400
    %v1552 = vunpack.c.h.b16 %v1400
    %v1553 = vunpack.c.l.b16 %v1401
    %v1554 = vunpack.c.l.b16 %v1402
    %v1555 = vunpack.c.h.b16 %v1402
    %v1556 = vunpack.c.l.b16 %v1403
    %v1557 = vunpack.c.l.b16 %v1404
    %v1558 = vunpack.c.h.b16 %v1404
    %v1559 = vunpack.c.l.b16 %v1405
    %v1560 = vunpack.c.l.b16 %v1406
    %v1561 = vunpack.c.h.b16 %v1406
    %v1562 = vunpack.c.l.b16 %v1407
    %v1563 = vunpack.c.l.b16 %v1408
    %v1564 = vunpack.c.h.b16 %v1408
    %v1565 = vunpack.c.l.b16 %v1409
    %v1566 = vunpack.c.l.b16 %v1410
    %v1567 = vunpack.c.h.b16 %v1410
    %v1568 = vunpack.c.l.b16 %v1411
    %v1569 = vunpack.c.l.b16 %v1412
    %v1570 = vunpack.c.h.b16 %v1412
    %v1571 = vunpack.c.l.b16 %v1413
    %v1572 = vunpack.c.l.b16 %v1414
    %v1573 = vunpack.c.h.b16 %v1414
    %v1574 = vunpack.c.l.b16 %v1415
    %v1575 = vunpack.c.l.b16 %v1416
    %v1576 = vunpack.c.h.b16 %v1416
    %v1577 = vunpack.c.l.b16 %v1417
    %v1578 = vunpack.c.l.b16 %v1418
    %v1579 = vunpack.c.h.b16 %v1418
    %v1580 = vunpack.c.l.b16 %v1419
    %v1581 = vunpack.c.l.b16 %v1420
    %v1582 = vunpack.c.h.b16 %v1420
    %v1583 = vunpack.c.l.b16 %v1421
    %v1584 = vunpack.c.l.b16 %v1422
    %v1585 = vunpack.c.h.b16 %v1422
    %v1586 = vunpack.c.l.b16 %v1423
    %v1587 = vunpack.c.l.b16 %v1424
    %v1588 = vunpack.c.h.b16 %v1424
    %v1589 = vunpack.c.l.b16 %v1425
    %v1590 = vunpack.c.l.b16 %v1426
    %v1591 = vunpack.c.h.b16 %v1426
    %v1592 = vunpack.c.l.b16 %v1427
    %v1593 = vunpack.c.l.b16 %v1428
    %v1594 = vunpack.c.h.b16 %v1428
    %v1595 = vunpack.c.l.b16 %v1429
    %v1596 = vunpack.c.l.b16 %v1430
    %v1597 = vunpack.c.h.b16 %v1430
    %v1598 = vunpack.c.l.b16 %v1431
    %v1599 = vunpack.c.l.b16 %v1432
    %v1600 = vunpack.c.h.b16 %v1432
    %v1601 = vunpack.c.l.b16 %v1433
    %v1602 = vunpack.c.l.b16 %v1434
    %v1603 = vunpack.c.h.b16 %v1434
    %v1604 = vunpack.c.l.b16 %v1435
    %v1605 = vunpack.c.l.b16 %v1436
    %v1606 = vunpack.c.h.b16 %v1436
    %v1607 = vunpack.c.l.b16 %v1437
    %v1608 = vunpack.c.l.b16 %v1438
    %v1609 = vunpack.c.h.b16 %v1438
    %v1610 = vunpack.c.l.b16 %v1439
    %v1611 = vunpack.c.l.b16 %v1440
    %v1612 = vunpack.c.h.b16 %v1440
    %v1613 = vunpack.c.l.b16 %v1441
    %v1614 = vunpack.c.l.b16 %v1442
    %v1615 = vunpack.c.h.b16 %v1442
    %v1616 = vunpack.c.l.b16 %v1443
    %v1617 = vunpack.c.l.b16 %v1444
    %v1618 = vunpack.c.h.b16 %v1444
    %v1619 = vunpack.c.l.b16 %v1445
    %v1620 = vunpack.c.l.b16 %v1446
    %v1621 = vunpack.c.h.b16 %v1446
    %v1622 = vunpack.c.l.b16 %v1447
    %v1623 = vunpack.c.l.b16 %v1448
    %v1624 = vunpack.c.h.b16 %v1448
    %v1625 = vunpack.c.l.b16 %v1449
    %v1626 = vunpack.c.l.b16 %v1450
    %v1627 = vunpack.c.h.b16 %v1450
    %v1628 = vunpack.c.l.b16 %v1451
    %v1629 = vpack.c.b16 %v1536, %v1533
    %v1630 = vpack.c.b16 %v1537, %v1534
    %v1631 = vpack.c.b16 %v1538, %v1535
    %v1632 = vpack.c.b16 %v1542, %v1539
    %v1633 = vpack.c.b16 %v1543, %v1540
    %v1634 = vpack.c.b16 %v1544, %v1541
    %v1635 = vpack.c.b16 %v1548, %v1545
    %v1636 = vpack.c.b16 %v1549, %v1546
    %v1637 = vpack.c.b16 %v1550, %v1547
    %v1638 = vpack.c.b16 %v1554, %v1551
    %v1639 = vpack.c.b16 %v1555, %v1552
    %v1640 = vpack.c.b16 %v1556, %v1553
    %v1641 = vpack.c.b16 %v1560, %v1557
    %v1642 = vpack.c.b16 %v1561, %v1558
    %v1643 = vpack.c.b16 %v1562, %v1559
    %v1644 = vpack.c.b16 %v1566, %v1563
    %v1645 = vpack.c.b16 %v1567, %v1564
    %v1646 = vpack.c.b16 %v1568, %v1565
    %v1647 = vpack.c.b16 %v1572, %v1569
    %v1648 = vpack.c.b16 %v1573, %v1570
    %v1649 = vpack.c.b16 %v1574, %v1571
    %v1650 = vpack.c.b16 %v1578, %v1575
    %v1651 = vpack.c.b16 %v1579, %v1576
    %v1652 = vpack.c.b16 %v1580, %v1577
    %v1653 = vpack.c.b16 %v1584, %v1581
    %v1654 = vpack.c.b16 %v1585, %v1582
    %v1655 = vpack.c.b16 %v1586, %v1583
    %v1656 = vpack.c.b16 %v1590, %v1587
    %v1657 = vpack.c.b16 %v1591, %v1588
    %v1658 = vpack.c.b16 %v1592, %v1589
    %v1659 = vpack.c.b16 %v1596, %v1593
    %v1660 = vpack.c.b16 %v1597, %v1594
    %v1661 = vpack.c.b16 %v1598, %v1595
    %v1662 = vpack.c.b16 %v1602, %v1599
    %v1663 = vpack.c.b16 %v1603, %v1600
    %v1664 = vpack.c.b16 %v1604, %v1601
    %v1665 = vpack.c.b16 %v1608, %v1605
    %v1666 = vpack.c.b16 %v1609, %v1606
    %v1667 = vpack.c.b16 %v1610, %v1607
    %v1668 = vpack.c.b16 %v1614, %v1611
    %v1669 = vpack.c.b16 %v1615, %v1612
    %v1670 = vpack.c.b16 %v1616, %v1613
    %v1671 = vpack.c.b16 %v1620, %v1617
    %v1672 = vpack.c.b16 %v1621, %v1618
    %v1673 = vpack.c.b16 %v1622, %v1619
    %v1674 = vpack.c.b16 %v1626, %v1623
    %v1675 = vpack.c.b16 %v1627, %v1624
    %v1676 = vpack.c.b16 %v1628, %v1625
    %1725 = vmatprep.subr.bf16.mxu0 %v1630
    %1726 = vmatpush1.bf16.msra.mxu0 %v1629
    %1727 = vmatprep.subr.bf16.mxu0 %v1633
    %1728 = vmatpush1.bf16.msra.mxu0 %v1632
    %1729 = vmatprep.subr.bf16.mxu0 %v1636
    %1730 = vmatpush1.bf16.msra.mxu0 %v1635
    %1731 = vmatprep.subr.bf16.mxu0 %v1639
    %1732 = vmatpush1.bf16.msra.mxu0 %v1638
    %1733 = vmatprep.subr.bf16.mxu0 %v1642
    %1734 = vmatpush1.bf16.msra.mxu0 %v1641
    %1735 = vmatprep.subr.bf16.mxu0 %v1645
    %1736 = vmatpush1.bf16.msra.mxu0 %v1644
    %1737 = vmatprep.subr.bf16.mxu0 %v1648
    %1738 = vmatpush1.bf16.msra.mxu0 %v1647
    %1739 = vmatprep.subr.bf16.mxu0 %v1651
    %1740 = vmatpush1.bf16.msra.mxu0 %v1650
    %1741 = vmatprep.subr.bf16.mxu0 %v1654
    %1742 = vmatpush1.bf16.msra.mxu0 %v1653
    %1743 = vmatprep.subr.bf16.mxu0 %v1657
    %1744 = vmatpush1.bf16.msra.mxu0 %v1656
    %1745 = vmatprep.subr.bf16.mxu0 %v1660
    %1746 = vmatpush1.bf16.msra.mxu0 %v1659
    %1747 = vmatprep.subr.bf16.mxu0 %v1663
    %1748 = vmatpush1.bf16.msra.mxu0 %v1662
    %1749 = vmatprep.subr.bf16.mxu0 %v1666
    %1750 = vmatpush1.bf16.msra.mxu0 %v1665
    %1751 = vmatprep.subr.bf16.mxu0 %v1669
    %1752 = vmatpush1.bf16.msra.mxu0 %v1668
    %1753 = vmatprep.subr.bf16.mxu0 %v1672
    %1754 = vmatpush1.bf16.msra.mxu0 %v1671
    %1755 = vmatprep.subr.bf16.mxu0 %v1675
    %1756 = vmatpush1.bf16.msra.mxu0 %v1674
    %1757 = vmatprep.mubr.bf16.mxu0 %v1387
    %1758 = vmatmul.mubr.bf16.gmra.mrb[0].mxu0 %v1386
    %v1759 = vpop.f32.mrb[0].mxu0
    %v1760 = vadd.f32 %v1457, %v1759
    %v1761 = vpop.f32.mrb[0].mxu0
    %v1762 = vadd.f32 %v1461, %v1761
    %v1763 = vpop.f32.mrb[0].mxu0
    %v1764 = vpop.f32.mrb[0].mxu0
    %1765 = vdwg.mxu0
    %1766 = vmatprep.subr.bf16.mxu0 0
    %1767 = vmatpush1.bf16.msra.mxu0 %v1631
    %1768 = vmatprep.subr.bf16.mxu0 0
    %1769 = vmatpush1.bf16.msra.mxu0 %v1634
    %1770 = vmatprep.subr.bf16.mxu0 0
    %1771 = vmatpush1.bf16.msra.mxu0 %v1637
    %1772 = vmatprep.subr.bf16.mxu0 0
    %1773 = vmatpush1.bf16.msra.mxu0 %v1640
    %1774 = vmatprep.subr.bf16.mxu0 0
    %1775 = vmatpush1.bf16.msra.mxu0 %v1643
    %1776 = vmatprep.subr.bf16.mxu0 0
    %1777 = vmatpush1.bf16.msra.mxu0 %v1646
    %1778 = vmatprep.subr.bf16.mxu0 0
    %1779 = vmatpush1.bf16.msra.mxu0 %v1649
    %1780 = vmatprep.subr.bf16.mxu0 0
    %1781 = vmatpush1.bf16.msra.mxu0 %v1652
    %1782 = vmatprep.subr.bf16.mxu0 0
    %1783 = vmatpush1.bf16.msra.mxu0 %v1655
    %1784 = vmatprep.subr.bf16.mxu0 0
    %1785 = vmatpush1.bf16.msra.mxu0 %v1658
    %1786 = vmatprep.subr.bf16.mxu0 0
    %1787 = vmatpush1.bf16.msra.mxu0 %v1661
    %1788 = vmatprep.subr.bf16.mxu0 0
    %1789 = vmatpush1.bf16.msra.mxu0 %v1664
    %1790 = vmatprep.subr.bf16.mxu0 0
    %1791 = vmatpush1.bf16.msra.mxu0 %v1667
    %1792 = vmatprep.subr.bf16.mxu0 0
    %1793 = vmatpush1.bf16.msra.mxu0 %v1670
    %1794 = vmatprep.subr.bf16.mxu0 0
    %1795 = vmatpush1.bf16.msra.mxu0 %v1673
    %1796 = vmatprep.subr.bf16.mxu0 0
    %1797 = vmatpush1.bf16.msra.mxu0 %v1676
    %1798 = vmatprep.mubr.bf16.mxu0 %v1387
    %1799 = vmatmul.mubr.bf16.gmra.mrb[0].mxu0 %v1386
    %v1800 = vpop.f32.mrb[0].mxu0
    %v1801 = vadd.f32 %v1465, %v1800
    %v1802 = vpop.f32.mrb[0].mxu0
    %v1803 = vpop.f32.mrb[0].mxu0
    %v1804 = vpop.f32.mrb[0].mxu0
    %1805 = vdwg.mxu0
    %v1806 = vpack.c.bf16 %v1760, %v1760
    %v1807 = vpack.c.bf16 %v1762, %v1762
    %v1808 = vpack.c.bf16 %v1801, %v1801
    %v1812 = vunpack.c.l.b16 %v1806
    %v1813 = vunpack.c.l.b16 %v1807
    %v1814 = vunpack.c.l.b16 %v1808
    %v1815 = vpack.c.b16 %v1813, %v1812
    %v1816 = vpack.c.b16 %v1814, %v1814
    %1819 = vst [vmem:[#allocation14] sm:$0xff] %v1815
    %1820 = vst [vmem:[#allocation14 + $0x8] sm:$0xf] %v1816
    // Predicated region
    $region62: #{tpu_custom_call.1} parent=1 // pred_check
      _
    $region63: #{tpu_custom_call.1} parent=1 // pred_check_branch
      %1822 = sbr.rel (0) target = $region65
    $region64: #{tpu_custom_call.1} parent=1 // pred_region
      %s1824 = ssub.s32 192, 192
      %1825 = vsyncadd [#allocation4], %s1824
      %s1827 = sshll.u32 [#allocation14], 4
      %s1828 = int_to_ptr.vmem [resolvable:$true] %s1827
      %1830 = dma.vmem_to_hbm [thread:$0]  %s1828, 192, %s8, [#allocation4]
    $region65: #{tpu_custom_call.1} parent=1 // pred_fallthru
      _
    // Predicated region
    $region66: #{tpu_custom_call.1} parent=1 // pred_check
      _
    $region67: #{tpu_custom_call.1} parent=1 // pred_check_branch
      %1832 = sbr.rel (0) target = $region69
    $region68: #{tpu_custom_call.1} parent=1 // pred_region
      %1833 = dma.done [#allocation4], 192
    $region69: #{tpu_custom_call.1} parent=1 // pred_fallthru
      _
    %1834 = vsyncpa [#allocation3], 1
    %1835 = vsyncpa [#allocation6], 1
    %1836 = vsyncpa [#allocation9], 1
    %1837 = vsyncpa [#allocation12], 1
    %1838 = vsyncpa [#allocation4], 1

</llo_original>
